<compile_context>
chip_gen: v7x
topology: tpu7x:2x2x1
jax: 0.10.0
libtpu: 0.0.40
codegen_flags: <defaults>
</compile_context>

<pallas_src>
import jax
import jax.numpy as jnp
from jax import lax
from jax.experimental import pallas as pl
from jax.experimental.pallas import tpu as pltpu

KSIZE = 3          # cfg.encoder.ksize
VOCAB = 32         # cfg.vocab_size
EMBED = 16         # cfg.encoder.embed_dim
C1 = 32            # cfg.encoder.base_dim  (depth=2 -> cnn_dims = [32, 32])
C2 = 32
HID = 64           # cfg.head.mlp_chans = [64]
OUT = 8            # cfg.head.num_output
OUT_PAD = 128      # lane-dense padded output width (wrapper slices back to OUT)


def model_kernel(tok_ref, emb_ref, w1_ref, b1_ref, w2_ref, b2_ref,
                 wh1_ref, bh1_ref, wh2_ref, bh2_ref, o_ref):
    """Fused: embed (one-hot matmul) -> 2x causal conv1d(im2col)+ReLU -> avg pool -> MLP."""
    NB, L = tok_ref.shape

    # ---- Embedding lookup as one-hot @ table (exact, MXU-friendly, no gather) ----
    tok = tok_ref[...]
    onehot = (tok[:, :, None] ==
              lax.broadcasted_iota(jnp.int32, (NB, L, VOCAB), 2)).astype(jnp.float32)
    x = jnp.dot(onehot.reshape(NB * L, VOCAB), emb_ref[...],
                preferred_element_type=jnp.float32).reshape(NB, L, EMBED)

    # ---- causal im2col: pad time once with K-1 leading zeros, take K static slices,
    #      concat along the channel (lane) axis -> single MXU contraction of K*Cin ----
    def causal_im2col(h, cin):
        hp = jnp.pad(h, ((0, 0), (KSIZE - 1, 0), (0, 0)))          # (NB, L+K-1, cin)
        cols = [hp[:, k:k + L, :] for k in range(KSIZE)]           # static slices
        return jnp.concatenate(cols, axis=-1).reshape(NB * L, KSIZE * cin)

    # ---- CausalConv1d #1 + ReLU (single matmul, contraction = K*EMBED) ----
    h1 = jnp.dot(causal_im2col(x, EMBED), w1_ref[...],
                 preferred_element_type=jnp.float32) + b1_ref[...]
    h1 = jnp.maximum(h1, 0.0).reshape(NB, L, C1)

    # ---- CausalConv1d #2 + ReLU (single matmul, contraction = K*C1) ----
    h2 = jnp.dot(causal_im2col(h1, C1), w2_ref[...],
                 preferred_element_type=jnp.float32) + b2_ref[...]
    h2 = jnp.maximum(h2, 0.0).reshape(NB, L, C2)

    # ---- AdaptiveAvgPool1d(1).squeeze(-1): sum over time * (1/L) (exact) ----
    pooled = jnp.sum(h2, axis=1) * (1.0 / L)          # (NB, C2)

    # ---- head MLP: Linear -> ReLU -> Linear (output pre-padded to 128 lanes) ----
    z = jnp.dot(pooled, wh1_ref[...], preferred_element_type=jnp.float32) + bh1_ref[...]
    z = jnp.maximum(z, 0.0)
    z = jnp.dot(z, wh2_ref[...], preferred_element_type=jnp.float32) + bh2_ref[...]
    o_ref[...] = z.astype(o_ref.dtype)                # full (NB, 128) unmasked store


def model_forward(tokens, mask, params, nb=None):
    # pool_type='avg' -> is_masked=False: mask is accepted but unused (as in the module).
    del mask
    N, L = tokens.shape
    if nb is None:
        nb = N if N <= 8 else 8          # batch tile: multiple of 8 (or full N)
    assert N % nb == 0, (N, nb)

    # Pure layout plumbing (no compute): fold the K taps into im2col weights and
    # zero-pad the final head weight/bias to a lane-dense 128-wide output.
    w1 = params["w1"].reshape(KSIZE * EMBED, C1)
    w2 = params["w2"].reshape(KSIZE * C1, C2)
    wh2p = jnp.zeros((HID, OUT_PAD), jnp.float32).at[:, :OUT].set(params["wh2"])
    bh2p = jnp.zeros((1, OUT_PAD), jnp.float32).at[:, :OUT].set(params["bh2"])

    rep = lambda b: (0, 0)               # weights: same block every grid step
    fn = pl.pallas_call(
        model_kernel,
        out_shape=jax.ShapeDtypeStruct((N, OUT_PAD), jnp.float32),
        grid=(N // nb,),
        in_specs=[
            pl.BlockSpec((nb, L), lambda b: (b, 0)),          # tokens (int32)
            pl.BlockSpec((VOCAB, EMBED), rep),                # embed table
            pl.BlockSpec((KSIZE * EMBED, C1), rep),           # conv1 im2col weight
            pl.BlockSpec((1, C1), rep),                       # conv1 bias
            pl.BlockSpec((KSIZE * C1, C2), rep),              # conv2 im2col weight
            pl.BlockSpec((1, C2), rep),                       # conv2 bias
            pl.BlockSpec((C2, HID), rep),                     # head fc1 weight
            pl.BlockSpec((1, HID), rep),                      # head fc1 bias
            pl.BlockSpec((HID, OUT_PAD), rep),                # head fc2 weight (padded)
            pl.BlockSpec((1, OUT_PAD), rep),                  # head fc2 bias (padded)
        ],
        out_specs=pl.BlockSpec((nb, OUT_PAD), lambda b: (b, 0)),
        compiler_params=pltpu.CompilerParams(
            dimension_semantics=("parallel",),
            # Per-block working set is O(nb*L*(K*C1+C2)*4B) ~ a few hundred KiB,
            # so 32 MiB is plenty of headroom on v5e/v6e/v7x alike.
            vmem_limit_bytes=32 * 1024 * 1024,
        ),
    )
    out = fn(tokens.astype(jnp.int32), params["embed"], w1, params["b1"],
             w2, params["b2"], params["wh1"], params["bh1"], wh2p, bh2p)
    return out[:, :OUT]


def init_params(key):
    ks = jax.random.split(key, 9)

    def rnd(k, shape, scale=0.05):
        return scale * jax.random.normal(k, shape, jnp.float32)

    return {
        "embed": rnd(ks[0], (VOCAB, EMBED), 1.0),
        "w1": rnd(ks[1], (KSIZE, EMBED, C1)),   # torch layout (C1, EMBED, K) pre-transposed
        "b1": rnd(ks[2], (1, C1)),
        "w2": rnd(ks[3], (KSIZE, C1, C2)),
        "b2": rnd(ks[4], (1, C2)),
        "wh1": rnd(ks[5], (C2, HID)),
        "bh1": rnd(ks[6], (1, HID)),
        "wh2": rnd(ks[7], (HID, OUT)),
        "bh2": rnd(ks[8], (1, OUT)),
    }


def reference_forward(tokens, params):
    """Pure-JAX reference matching the PyTorch forward semantics."""
    x = jnp.take(params["embed"], tokens, axis=0).astype(jnp.float32)   # (N, L, E)

    def causal_conv_relu(x, w, b):
        Nl, Ll, _ = x.shape
        xp = jnp.pad(x, ((0, 0), (KSIZE - 1, 0), (0, 0)))
        y = sum(jnp.einsum("nlc,cd->nld", xp[:, t:t + Ll, :], w[t]) for t in range(KSIZE))
        return jax.nn.relu(y + b[None])

    h = causal_conv_relu(x, params["w1"], params["b1"])
    h = causal_conv_relu(h, params["w2"], params["b2"])
    p = h.mean(axis=1)
    z = jax.nn.relu(p @ params["wh1"] + params["bh1"])
    return z @ params["wh2"] + params["bh2"]


if __name__ == "__main__":
    key = jax.random.PRNGKey(0)
    k_tok, k_par = jax.random.split(key)
    params = init_params(k_par)

    N, L = 16, 32                         # small shapes; grid=(2,) over the batch
    tokens = jax.random.randint(k_tok, (N, L), 0, VOCAB, dtype=jnp.int32)
    mask = jnp.ones((N, L), jnp.float32)  # unused for 'avg' pooling

    out = model_forward(tokens, mask, params)
    out = jax.block_until_ready(out)

    ref = reference_forward(tokens, params)
    assert out.shape == (N, OUT), out.shape
    assert jnp.allclose(out, ref, atol=1e-4, rtol=1e-4), (out, ref)
    print("KERNEL_OK")
</pallas_src>

<mosaic_0001>
module attributes {stable_mosaic.version = 11 : i64} {
  func.func @model_kernel(%arg0: i32, %arg1: memref<8x32xi32, #tpu.memory_space<vmem>>, %arg2: memref<32x16xf32, #tpu.memory_space<vmem>>, %arg3: memref<48x32xf32, #tpu.memory_space<vmem>>, %arg4: memref<1x32xf32, #tpu.memory_space<vmem>>, %arg5: memref<96x32xf32, #tpu.memory_space<vmem>>, %arg6: memref<1x32xf32, #tpu.memory_space<vmem>>, %arg7: memref<32x64xf32, #tpu.memory_space<vmem>>, %arg8: memref<1x64xf32, #tpu.memory_space<vmem>>, %arg9: memref<64x128xf32, #tpu.memory_space<vmem>>, %arg10: memref<1x128xf32, #tpu.memory_space<vmem>>, %arg11: memref<8x128xf32, #tpu.memory_space<vmem>>) attributes {dimension_semantics = [#tpu.dimension_semantics<parallel>], iteration_bounds = array<i64: 2>, scalar_prefetch = 0 : i64, scratch_operands = 0 : i64, tpu.core_type = #tpu.core_type<tc>, window_params = [{transform_indices = @transform_0, window_bounds = array<i64: 8, 32>}, {pipeline_mode = #tpu.pipeline_mode<synchronous>, transform_indices = @transform_1, window_bounds = array<i64: 32, 16>}, {pipeline_mode = #tpu.pipeline_mode<synchronous>, transform_indices = @transform_2, window_bounds = array<i64: 48, 32>}, {pipeline_mode = #tpu.pipeline_mode<synchronous>, transform_indices = @transform_3, window_bounds = array<i64: 1, 32>}, {pipeline_mode = #tpu.pipeline_mode<synchronous>, transform_indices = @transform_4, window_bounds = array<i64: 96, 32>}, {pipeline_mode = #tpu.pipeline_mode<synchronous>, transform_indices = @transform_5, window_bounds = array<i64: 1, 32>}, {pipeline_mode = #tpu.pipeline_mode<synchronous>, transform_indices = @transform_6, window_bounds = array<i64: 32, 64>}, {pipeline_mode = #tpu.pipeline_mode<synchronous>, transform_indices = @transform_7, window_bounds = array<i64: 1, 64>}, {pipeline_mode = #tpu.pipeline_mode<synchronous>, transform_indices = @transform_8, window_bounds = array<i64: 64, 128>}, {pipeline_mode = #tpu.pipeline_mode<synchronous>, transform_indices = @transform_9, window_bounds = array<i64: 1, 128>}, {transform_indices = @transform_10, window_bounds = array<i64: 8, 128>}]} {
    %c0 = arith.constant 0 : index
    %c0_0 = arith.constant 0 : index
    %0 = vector.load %arg1[%c0, %c0_0] : memref<8x32xi32, #tpu.memory_space<vmem>>, vector<8x32xi32>
    %1 = vector.shape_cast %0 : vector<8x32xi32> to vector<8x32x1xi32>
    %2 = tpu.iota {dimensions = array<i32: 2>} : vector<8x32x32xi32>
    %3 = vector.broadcast %1 : vector<8x32x1xi32> to vector<8x32x32xi32>
    %4 = arith.cmpi eq, %3, %2 : vector<8x32x32xi32>
    %5 = arith.extui %4 : vector<8x32x32xi1> to vector<8x32x32xi32>
    %6 = arith.sitofp %5 : vector<8x32x32xi32> to vector<8x32x32xf32>
    %7 = vector.shape_cast %6 : vector<8x32x32xf32> to vector<256x32xf32>
    %c0_1 = arith.constant 0 : index
    %c0_2 = arith.constant 0 : index
    %8 = vector.load %arg2[%c0_1, %c0_2] : memref<32x16xf32, #tpu.memory_space<vmem>>, vector<32x16xf32>
    %cst = arith.constant dense<0.000000e+00> : vector<256x16xf32>
    %9 = tpu.matmul %7, %8, %cst {dimension_numbers = #tpu.dot_dimension_numbers<[1], [0], [0], [1], [0, 0, 1, 1], [], []>} : vector<256x32xf32>, vector<32x16xf32>, vector<256x16xf32> -> vector<256x16xf32>
    %10 = vector.shape_cast %9 : vector<256x16xf32> to vector<8x32x16xf32>
    %c0_i32 = arith.constant 0 : i32
    %11 = arith.sitofp %c0_i32 : i32 to f32
    %12 = vector.broadcast %11 : f32 to vector<8x2x16xf32>
    %13 = tpu.concatenate %12, %10 in 1 : vector<8x2x16xf32>, vector<8x32x16xf32> -> vector<8x34x16xf32>
    %14 = vector.extract_strided_slice %13 {offsets = [0, 0, 0], sizes = [8, 32, 16], strides = [1, 1, 1]} : vector<8x34x16xf32> to vector<8x32x16xf32>
    %15 = vector.extract_strided_slice %13 {offsets = [0, 1, 0], sizes = [8, 32, 16], strides = [1, 1, 1]} : vector<8x34x16xf32> to vector<8x32x16xf32>
    %16 = vector.extract_strided_slice %13 {offsets = [0, 2, 0], sizes = [8, 32, 16], strides = [1, 1, 1]} : vector<8x34x16xf32> to vector<8x32x16xf32>
    %17 = tpu.concatenate %14, %15, %16 in 2 : vector<8x32x16xf32>, vector<8x32x16xf32>, vector<8x32x16xf32> -> vector<8x32x48xf32>
    %18 = vector.shape_cast %17 : vector<8x32x48xf32> to vector<256x48xf32>
    %c0_3 = arith.constant 0 : index
    %c0_4 = arith.constant 0 : index
    %19 = vector.load %arg3[%c0_3, %c0_4] : memref<48x32xf32, #tpu.memory_space<vmem>>, vector<48x32xf32>
    %cst_5 = arith.constant dense<0.000000e+00> : vector<256x32xf32>
    %20 = tpu.matmul %18, %19, %cst_5 {dimension_numbers = #tpu.dot_dimension_numbers<[1], [0], [0], [1], [0, 0, 1, 1], [], []>} : vector<256x48xf32>, vector<48x32xf32>, vector<256x32xf32> -> vector<256x32xf32>
    %c0_6 = arith.constant 0 : index
    %c0_7 = arith.constant 0 : index
    %21 = vector.load %arg4[%c0_6, %c0_7] : memref<1x32xf32, #tpu.memory_space<vmem>>, vector<1x32xf32>
    %22 = vector.broadcast %21 : vector<1x32xf32> to vector<256x32xf32>
    %23 = arith.addf %20, %22 : vector<256x32xf32>
    %cst_8 = arith.constant 0.000000e+00 : f32
    %24 = vector.broadcast %cst_8 : f32 to vector<256x32xf32>
    %25 = arith.maximumf %23, %24 : vector<256x32xf32>
    %26 = vector.shape_cast %25 : vector<256x32xf32> to vector<8x32x32xf32>
    %c0_i32_9 = arith.constant 0 : i32
    %27 = arith.sitofp %c0_i32_9 : i32 to f32
    %28 = vector.broadcast %27 : f32 to vector<8x2x32xf32>
    %29 = tpu.concatenate %28, %26 in 1 : vector<8x2x32xf32>, vector<8x32x32xf32> -> vector<8x34x32xf32>
    %30 = vector.extract_strided_slice %29 {offsets = [0, 0, 0], sizes = [8, 32, 32], strides = [1, 1, 1]} : vector<8x34x32xf32> to vector<8x32x32xf32>
    %31 = vector.extract_strided_slice %29 {offsets = [0, 1, 0], sizes = [8, 32, 32], strides = [1, 1, 1]} : vector<8x34x32xf32> to vector<8x32x32xf32>
    %32 = vector.extract_strided_slice %29 {offsets = [0, 2, 0], sizes = [8, 32, 32], strides = [1, 1, 1]} : vector<8x34x32xf32> to vector<8x32x32xf32>
    %33 = tpu.concatenate %30, %31, %32 in 2 : vector<8x32x32xf32>, vector<8x32x32xf32>, vector<8x32x32xf32> -> vector<8x32x96xf32>
    %34 = vector.shape_cast %33 : vector<8x32x96xf32> to vector<256x96xf32>
    %c0_10 = arith.constant 0 : index
    %c0_11 = arith.constant 0 : index
    %35 = vector.load %arg5[%c0_10, %c0_11] : memref<96x32xf32, #tpu.memory_space<vmem>>, vector<96x32xf32>
    %cst_12 = arith.constant dense<0.000000e+00> : vector<256x32xf32>
    %36 = tpu.matmul %34, %35, %cst_12 {dimension_numbers = #tpu.dot_dimension_numbers<[1], [0], [0], [1], [0, 0, 1, 1], [], []>} : vector<256x96xf32>, vector<96x32xf32>, vector<256x32xf32> -> vector<256x32xf32>
    %c0_13 = arith.constant 0 : index
    %c0_14 = arith.constant 0 : index
    %37 = vector.load %arg6[%c0_13, %c0_14] : memref<1x32xf32, #tpu.memory_space<vmem>>, vector<1x32xf32>
    %38 = vector.broadcast %37 : vector<1x32xf32> to vector<256x32xf32>
    %39 = arith.addf %36, %38 : vector<256x32xf32>
    %cst_15 = arith.constant 0.000000e+00 : f32
    %40 = vector.broadcast %cst_15 : f32 to vector<256x32xf32>
    %41 = arith.maximumf %39, %40 : vector<256x32xf32>
    %42 = vector.shape_cast %41 : vector<256x32xf32> to vector<8x32x32xf32>
    %cst_16 = arith.constant dense<0.000000e+00> : vector<8x32xf32>
    %43 = vector.multi_reduction <add>, %42, %cst_16 [1] : vector<8x32x32xf32> to vector<8x32xf32>
    %cst_17 = arith.constant 3.125000e-02 : f32
    %44 = vector.broadcast %cst_17 : f32 to vector<8x32xf32>
    %45 = arith.mulf %43, %44 : vector<8x32xf32>
    %c0_18 = arith.constant 0 : index
    %c0_19 = arith.constant 0 : index
    %46 = vector.load %arg7[%c0_18, %c0_19] : memref<32x64xf32, #tpu.memory_space<vmem>>, vector<32x64xf32>
    %cst_20 = arith.constant dense<0.000000e+00> : vector<8x64xf32>
    %47 = tpu.matmul %45, %46, %cst_20 {dimension_numbers = #tpu.dot_dimension_numbers<[1], [0], [0], [1], [0, 0, 1, 1], [], []>} : vector<8x32xf32>, vector<32x64xf32>, vector<8x64xf32> -> vector<8x64xf32>
    %c0_21 = arith.constant 0 : index
    %c0_22 = arith.constant 0 : index
    %48 = vector.load %arg8[%c0_21, %c0_22] : memref<1x64xf32, #tpu.memory_space<vmem>>, vector<1x64xf32>
    %49 = vector.broadcast %48 : vector<1x64xf32> to vector<8x64xf32>
    %50 = arith.addf %47, %49 : vector<8x64xf32>
    %cst_23 = arith.constant 0.000000e+00 : f32
    %51 = vector.broadcast %cst_23 : f32 to vector<8x64xf32>
    %52 = arith.maximumf %50, %51 : vector<8x64xf32>
    %c0_24 = arith.constant 0 : index
    %c0_25 = arith.constant 0 : index
    %53 = vector.load %arg9[%c0_24, %c0_25] : memref<64x128xf32, #tpu.memory_space<vmem>>, vector<64x128xf32>
    %cst_26 = arith.constant dense<0.000000e+00> : vector<8x128xf32>
    %54 = tpu.matmul %52, %53, %cst_26 {dimension_numbers = #tpu.dot_dimension_numbers<[1], [0], [0], [1], [0, 0, 1, 1], [], []>} : vector<8x64xf32>, vector<64x128xf32>, vector<8x128xf32> -> vector<8x128xf32>
    %c0_27 = arith.constant 0 : index
    %c0_28 = arith.constant 0 : index
    %55 = vector.load %arg10[%c0_27, %c0_28] : memref<1x128xf32, #tpu.memory_space<vmem>>, vector<1x128xf32>
    %56 = vector.broadcast %55 : vector<1x128xf32> to vector<8x128xf32>
    %57 = arith.addf %54, %56 : vector<8x128xf32>
    %c0_29 = arith.constant 0 : index
    %c0_30 = arith.constant 0 : index
    %58 = vector.load %arg11[%c0_29, %c0_30] : memref<8x128xf32, #tpu.memory_space<vmem>>, vector<8x128xf32>
    tpu.vector_store %arg11[%c0_29, %c0_30], %57 {strides = array<i32>} : memref<8x128xf32, #tpu.memory_space<vmem>>, vector<8x128xf32>,
    return
  }
  func.func @transform_0(%arg0: i32) -> (i32, i32) {
    %c0_i32 = arith.constant 0 : i32
    %c0_i32_0 = arith.constant 0 : i32
    return %arg0, %c0_i32 : i32, i32
  }
  func.func @transform_1(%arg0: i32) -> (i32, i32) {
    %c0_i32 = arith.constant 0 : i32
    %c0_i32_0 = arith.constant 0 : i32
    %c0_i32_1 = arith.constant 0 : i32
    return %c0_i32, %c0_i32_0 : i32, i32
  }
  func.func @transform_2(%arg0: i32) -> (i32, i32) {
    %c0_i32 = arith.constant 0 : i32
    %c0_i32_0 = arith.constant 0 : i32
    %c0_i32_1 = arith.constant 0 : i32
    return %c0_i32, %c0_i32_0 : i32, i32
  }
  func.func @transform_3(%arg0: i32) -> (i32, i32) {
    %c0_i32 = arith.constant 0 : i32
    %c0_i32_0 = arith.constant 0 : i32
    %c0_i32_1 = arith.constant 0 : i32
    return %c0_i32, %c0_i32_0 : i32, i32
  }
  func.func @transform_4(%arg0: i32) -> (i32, i32) {
    %c0_i32 = arith.constant 0 : i32
    %c0_i32_0 = arith.constant 0 : i32
    %c0_i32_1 = arith.constant 0 : i32
    return %c0_i32, %c0_i32_0 : i32, i32
  }
  func.func @transform_5(%arg0: i32) -> (i32, i32) {
    %c0_i32 = arith.constant 0 : i32
    %c0_i32_0 = arith.constant 0 : i32
    %c0_i32_1 = arith.constant 0 : i32
    return %c0_i32, %c0_i32_0 : i32, i32
  }
  func.func @transform_6(%arg0: i32) -> (i32, i32) {
    %c0_i32 = arith.constant 0 : i32
    %c0_i32_0 = arith.constant 0 : i32
    %c0_i32_1 = arith.constant 0 : i32
    return %c0_i32, %c0_i32_0 : i32, i32
  }
  func.func @transform_7(%arg0: i32) -> (i32, i32) {
    %c0_i32 = arith.constant 0 : i32
    %c0_i32_0 = arith.constant 0 : i32
    %c0_i32_1 = arith.constant 0 : i32
    return %c0_i32, %c0_i32_0 : i32, i32
  }
  func.func @transform_8(%arg0: i32) -> (i32, i32) {
    %c0_i32 = arith.constant 0 : i32
    %c0_i32_0 = arith.constant 0 : i32
    %c0_i32_1 = arith.constant 0 : i32
    return %c0_i32, %c0_i32_0 : i32, i32
  }
  func.func @transform_9(%arg0: i32) -> (i32, i32) {
    %c0_i32 = arith.constant 0 : i32
    %c0_i32_0 = arith.constant 0 : i32
    %c0_i32_1 = arith.constant 0 : i32
    return %c0_i32, %c0_i32_0 : i32, i32
  }
  func.func @transform_10(%arg0: i32) -> (i32, i32) {
    %c0_i32 = arith.constant 0 : i32
    %c0_i32_0 = arith.constant 0 : i32
    return %arg0, %c0_i32 : i32, i32
  }
}

</mosaic_0001>

<llo_original>
// kernel: tpu_custom_call.1
$region0: #{tpu_custom_call.1}
  #allocation0 [shape = 'u32[]', space=smem, size = 0x4, offset = 0x4, fixed_abs, tag = 'smem constant byte address 0x4 - core index']
  #allocation1 [shape = 'u32[144,128]{1,0:T(1,128)}', space=vmem, size = 0x12000, scoped, tag = 'internal scratch']
  %s0 = inlined_call_operand.vmem [shape: s32[16,32], index: 0, kind: input, shape index: {}]
  %s1 = inlined_call_operand.vmem [shape: f32[32,16], index: 1, kind: input, shape index: {}]
  %s2 = inlined_call_operand.vmem [shape: f32[48,32], index: 2, kind: input, shape index: {}]
  %s3 = inlined_call_operand.vmem [shape: f32[1,32], index: 3, kind: input, shape index: {}]
  %s4 = inlined_call_operand.vmem [shape: f32[96,32], index: 4, kind: input, shape index: {}]
  %s5 = inlined_call_operand.vmem [shape: f32[1,32], index: 5, kind: input, shape index: {}]
  %s6 = inlined_call_operand.vmem [shape: f32[32,64], index: 6, kind: input, shape index: {}]
  %s7 = inlined_call_operand.vmem [shape: f32[1,64], index: 7, kind: input, shape index: {}]
  %s8 = inlined_call_operand.vmem [shape: f32[64,128], index: 8, kind: input, shape index: {}]
  %s9 = inlined_call_operand.vmem [shape: f32[1,128], index: 9, kind: input, shape index: {}]
  %s10 = inlined_call_operand.hbm [shape: f32[16,128], index: 10, kind: output, shape index: {}]
  %s11 = sld [smem:[#allocation0]]
  $region73: #{tpu_custom_call.1} parent=0
    _
  %s13 = ssub.s32 1, %s11
  %s14 = scalar_select 0, %s13, %s11
  $region1: #{tpu_custom_call.1} parent=0
    #allocation2 [shape = 'u8[8192]{0}', space=vmem, size = 0x2000, scoped, tag = 'output window, operand 0']
    #allocation3 [shape = 's32[2]{0}', space=sflag, size = 0x8, scoped, tag = 'scoped memory for tpu_custom_call.1']
    %15 = vsyncpa [#allocation3], 0
    %s16 = scalar_lea.sflag [#allocation3], 1
    %17 = vsyncpa %s16, 0
    loop: start=0, step=1, limit=4
    $region2: #{tpu_custom_call.1} parent=1 // loop_pre_header
      _
    $region3: #{tpu_custom_call.1} parent=1 // loop_header
      %s19 = sphi 0, %s23
      %p20 = scmp.ge.s32.totalorder %s19, 4
      %s29 = sphi 0, %s31
      %s32 = sphi 0, %s29
      %s33 = sphi 0, %s32
      %s49 = sphi 0, %s33
      %s53 = sphi 0, %s53
      %s55 = sphi 0, %s53
      %s56 = sphi 0, %s55
      %s70 = sphi 0, %s56
      %s74 = sphi 0, %s74
      %s76 = sphi 0, %s74
      %s77 = sphi 0, %s76
      %s91 = sphi 0, %s77
      %s95 = sphi 0, %s95
      %s97 = sphi 0, %s95
      %s98 = sphi 0, %s97
      %s112 = sphi 0, %s98
      %s116 = sphi 0, %s116
      %s118 = sphi 0, %s116
      %s119 = sphi 0, %s118
      %s133 = sphi 0, %s119
      %s137 = sphi 0, %s137
      %s139 = sphi 0, %s137
      %s140 = sphi 0, %s139
      %s154 = sphi 0, %s140
      %s158 = sphi 0, %s158
      %s160 = sphi 0, %s158
      %s161 = sphi 0, %s160
      %s175 = sphi 0, %s161
      %s179 = sphi 0, %s179
      %s181 = sphi 0, %s179
      %s182 = sphi 0, %s181
      %s196 = sphi 0, %s182
      %s200 = sphi 0, %s200
      %s202 = sphi 0, %s200
      %s203 = sphi 0, %s202
      %s217 = sphi 0, %s203
      %s221 = sphi 0, %s221
      %s223 = sphi 0, %s221
      %s224 = sphi 0, %s223
      %s238 = sphi 0, %s224
      %s244 = sphi 0, %s246
      %s247 = sphi 0, %s244
      %s248 = sphi 0, %s247
      %s264 = sphi 0, %s248
    $region4: #{tpu_custom_call.1} parent=1 // loop_header_branch
      %22 = sbr.rel (%p20) target = $region8
    $region5: #{tpu_custom_call.1} parent=1 // loop_body
      %s24 = ssub.s32 %s19, 1
      %s25 = ssub.s32 %s19, 2
      %s26 = sadd.s32 %s19, 1
      %s27 = ssub.s32 %s19, %s26
      %p28 = scmp.eq.s32.totalorder %s27, 0
      %s30 = sadd.s32 %s29, 1
      %s31 = scalar_select %p28, %s29, %s30
      %p34 = pneg %p28
      %p35 = scmp.eq.s32.totalorder %s19, 1
      %p36 = por %p34, %p35
      %p37 = scmp.ne.s32.totalorder %s29, %s32
      %p38 = scmp.eq.s32.totalorder %s19, 0
      %p39 = por %p37, %p38
      %p40 = scmp.ne.s32.totalorder %s29, %s32
      %p41 = scmp.eq.s32.totalorder %s24, 1
      %p42 = por %p40, %p41
      %p43 = scmp.ne.s32.totalorder %s32, %s33
      %p44 = scmp.eq.s32.totalorder %s24, 0
      %p45 = por %p43, %p44
      %p46 = scmp.ne.s32.totalorder %s32, %s33
      %p47 = scmp.eq.s32.totalorder %s25, 1
      %p48 = por %p46, %p47
      %p50 = scmp.ne.s32.totalorder %s33, %s49
      %p51 = scmp.eq.s32.totalorder %s25, 0
      %p52 = por %p50, %p51
      %s54 = sadd.s32 %s53, 1
      %p57 = scmp.eq.s32.totalorder %s19, 1
      %p58 = scmp.ne.s32.totalorder %s53, %s55
      %p59 = scmp.eq.s32.totalorder %s19, 0
      %p60 = por %p58, %p59
      %p61 = scmp.ne.s32.totalorder %s53, %s55
      %p62 = scmp.eq.s32.totalorder %s24, 1
      %p63 = por %p61, %p62
      %p64 = scmp.ne.s32.totalorder %s55, %s56
      %p65 = scmp.eq.s32.totalorder %s24, 0
      %p66 = por %p64, %p65
      %p67 = scmp.ne.s32.totalorder %s55, %s56
      %p68 = scmp.eq.s32.totalorder %s25, 1
      %p69 = por %p67, %p68
      %p71 = scmp.ne.s32.totalorder %s56, %s70
      %p72 = scmp.eq.s32.totalorder %s25, 0
      %p73 = por %p71, %p72
      %s75 = sadd.s32 %s74, 1
      %p78 = scmp.eq.s32.totalorder %s19, 1
      %p79 = scmp.ne.s32.totalorder %s74, %s76
      %p80 = scmp.eq.s32.totalorder %s19, 0
      %p81 = por %p79, %p80
      %p82 = scmp.ne.s32.totalorder %s74, %s76
      %p83 = scmp.eq.s32.totalorder %s24, 1
      %p84 = por %p82, %p83
      %p85 = scmp.ne.s32.totalorder %s76, %s77
      %p86 = scmp.eq.s32.totalorder %s24, 0
      %p87 = por %p85, %p86
      %p88 = scmp.ne.s32.totalorder %s76, %s77
      %p89 = scmp.eq.s32.totalorder %s25, 1
      %p90 = por %p88, %p89
      %p92 = scmp.ne.s32.totalorder %s77, %s91
      %p93 = scmp.eq.s32.totalorder %s25, 0
      %p94 = por %p92, %p93
      %s96 = sadd.s32 %s95, 1
      %p99 = scmp.eq.s32.totalorder %s19, 1
      %p100 = scmp.ne.s32.totalorder %s95, %s97
      %p101 = scmp.eq.s32.totalorder %s19, 0
      %p102 = por %p100, %p101
      %p103 = scmp.ne.s32.totalorder %s95, %s97
      %p104 = scmp.eq.s32.totalorder %s24, 1
      %p105 = por %p103, %p104
      %p106 = scmp.ne.s32.totalorder %s97, %s98
      %p107 = scmp.eq.s32.totalorder %s24, 0
      %p108 = por %p106, %p107
      %p109 = scmp.ne.s32.totalorder %s97, %s98
      %p110 = scmp.eq.s32.totalorder %s25, 1
      %p111 = por %p109, %p110
      %p113 = scmp.ne.s32.totalorder %s98, %s112
      %p114 = scmp.eq.s32.totalorder %s25, 0
      %p115 = por %p113, %p114
      %s117 = sadd.s32 %s116, 1
      %p120 = scmp.eq.s32.totalorder %s19, 1
      %p121 = scmp.ne.s32.totalorder %s116, %s118
      %p122 = scmp.eq.s32.totalorder %s19, 0
      %p123 = por %p121, %p122
      %p124 = scmp.ne.s32.totalorder %s116, %s118
      %p125 = scmp.eq.s32.totalorder %s24, 1
      %p126 = por %p124, %p125
      %p127 = scmp.ne.s32.totalorder %s118, %s119
      %p128 = scmp.eq.s32.totalorder %s24, 0
      %p129 = por %p127, %p128
      %p130 = scmp.ne.s32.totalorder %s118, %s119
      %p131 = scmp.eq.s32.totalorder %s25, 1
      %p132 = por %p130, %p131
      %p134 = scmp.ne.s32.totalorder %s119, %s133
      %p135 = scmp.eq.s32.totalorder %s25, 0
      %p136 = por %p134, %p135
      %s138 = sadd.s32 %s137, 1
      %p141 = scmp.eq.s32.totalorder %s19, 1
      %p142 = scmp.ne.s32.totalorder %s137, %s139
      %p143 = scmp.eq.s32.totalorder %s19, 0
      %p144 = por %p142, %p143
      %p145 = scmp.ne.s32.totalorder %s137, %s139
      %p146 = scmp.eq.s32.totalorder %s24, 1
      %p147 = por %p145, %p146
      %p148 = scmp.ne.s32.totalorder %s139, %s140
      %p149 = scmp.eq.s32.totalorder %s24, 0
      %p150 = por %p148, %p149
      %p151 = scmp.ne.s32.totalorder %s139, %s140
      %p152 = scmp.eq.s32.totalorder %s25, 1
      %p153 = por %p151, %p152
      %p155 = scmp.ne.s32.totalorder %s140, %s154
      %p156 = scmp.eq.s32.totalorder %s25, 0
      %p157 = por %p155, %p156
      %s159 = sadd.s32 %s158, 1
      %p162 = scmp.eq.s32.totalorder %s19, 1
      %p163 = scmp.ne.s32.totalorder %s158, %s160
      %p164 = scmp.eq.s32.totalorder %s19, 0
      %p165 = por %p163, %p164
      %p166 = scmp.ne.s32.totalorder %s158, %s160
      %p167 = scmp.eq.s32.totalorder %s24, 1
      %p168 = por %p166, %p167
      %p169 = scmp.ne.s32.totalorder %s160, %s161
      %p170 = scmp.eq.s32.totalorder %s24, 0
      %p171 = por %p169, %p170
      %p172 = scmp.ne.s32.totalorder %s160, %s161
      %p173 = scmp.eq.s32.totalorder %s25, 1
      %p174 = por %p172, %p173
      %p176 = scmp.ne.s32.totalorder %s161, %s175
      %p177 = scmp.eq.s32.totalorder %s25, 0
      %p178 = por %p176, %p177
      %s180 = sadd.s32 %s179, 1
      %p183 = scmp.eq.s32.totalorder %s19, 1
      %p184 = scmp.ne.s32.totalorder %s179, %s181
      %p185 = scmp.eq.s32.totalorder %s19, 0
      %p186 = por %p184, %p185
      %p187 = scmp.ne.s32.totalorder %s179, %s181
      %p188 = scmp.eq.s32.totalorder %s24, 1
      %p189 = por %p187, %p188
      %p190 = scmp.ne.s32.totalorder %s181, %s182
      %p191 = scmp.eq.s32.totalorder %s24, 0
      %p192 = por %p190, %p191
      %p193 = scmp.ne.s32.totalorder %s181, %s182
      %p194 = scmp.eq.s32.totalorder %s25, 1
      %p195 = por %p193, %p194
      %p197 = scmp.ne.s32.totalorder %s182, %s196
      %p198 = scmp.eq.s32.totalorder %s25, 0
      %p199 = por %p197, %p198
      %s201 = sadd.s32 %s200, 1
      %p204 = scmp.eq.s32.totalorder %s19, 1
      %p205 = scmp.ne.s32.totalorder %s200, %s202
      %p206 = scmp.eq.s32.totalorder %s19, 0
      %p207 = por %p205, %p206
      %p208 = scmp.ne.s32.totalorder %s200, %s202
      %p209 = scmp.eq.s32.totalorder %s24, 1
      %p210 = por %p208, %p209
      %p211 = scmp.ne.s32.totalorder %s202, %s203
      %p212 = scmp.eq.s32.totalorder %s24, 0
      %p213 = por %p211, %p212
      %p214 = scmp.ne.s32.totalorder %s202, %s203
      %p215 = scmp.eq.s32.totalorder %s25, 1
      %p216 = por %p214, %p215
      %p218 = scmp.ne.s32.totalorder %s203, %s217
      %p219 = scmp.eq.s32.totalorder %s25, 0
      %p220 = por %p218, %p219
      %s222 = sadd.s32 %s221, 1
      %p225 = scmp.eq.s32.totalorder %s19, 1
      %p226 = scmp.ne.s32.totalorder %s221, %s223
      %p227 = scmp.eq.s32.totalorder %s19, 0
      %p228 = por %p226, %p227
      %p229 = scmp.ne.s32.totalorder %s221, %s223
      %p230 = scmp.eq.s32.totalorder %s24, 1
      %p231 = por %p229, %p230
      %p232 = scmp.ne.s32.totalorder %s223, %s224
      %p233 = scmp.eq.s32.totalorder %s24, 0
      %p234 = por %p232, %p233
      %p235 = scmp.ne.s32.totalorder %s223, %s224
      %p236 = scmp.eq.s32.totalorder %s25, 1
      %p237 = por %p235, %p236
      %p239 = scmp.ne.s32.totalorder %s224, %s238
      %p240 = scmp.eq.s32.totalorder %s25, 0
      %p241 = por %p239, %p240
      %s242 = ssub.s32 %s19, %s26
      %p243 = scmp.eq.s32.totalorder %s242, 0
      %s245 = sadd.s32 %s244, 1
      %s246 = scalar_select %p243, %s244, %s245
      %p249 = pneg %p243
      %p250 = scmp.eq.s32.totalorder %s19, 1
      %p251 = por %p249, %p250
      %p252 = scmp.ne.s32.totalorder %s244, %s247
      %p253 = scmp.eq.s32.totalorder %s19, 0
      %p254 = por %p252, %p253
      %p255 = scmp.ne.s32.totalorder %s244, %s247
      %p256 = scmp.eq.s32.totalorder %s24, 1
      %p257 = por %p255, %p256
      %p258 = scmp.ne.s32.totalorder %s247, %s248
      %p259 = scmp.eq.s32.totalorder %s24, 0
      %p260 = por %p258, %p259
      %p261 = scmp.ne.s32.totalorder %s247, %s248
      %p262 = scmp.eq.s32.totalorder %s25, 1
      %p263 = por %p261, %p262
      %p265 = scmp.ne.s32.totalorder %s248, %s264
      %p266 = scmp.eq.s32.totalorder %s25, 0
      %p267 = por %p265, %p266
      %p268 = scmp.le.s32.totalorder 1, %s19
      %p269 = scmp.lt.s32.totalorder %s19, 3
      %p270 = pnand %p268, %p269
      %p271 = pneg %p270
      // Predicated region
      $region9: #{tpu_custom_call.1} parent=5 // pred_check
        _
      $region10: #{tpu_custom_call.1} parent=5 // pred_check_branch
        %273 = sbr.rel (%p270) target = $region12
      $region11: #{tpu_custom_call.1} parent=5 // pred_region
        %s274 = ssub.s32 %s19, 1
        // Predicated region
        $region13: #{tpu_custom_call.1} parent=11 // pred_check
          %p275 = pneg %p66
        $region14: #{tpu_custom_call.1} parent=11 // pred_check_branch
          %277 = sbr.rel (%p275) target = $region16
        $region15: #{tpu_custom_call.1} parent=11 // pred_region
          _
        $region16: #{tpu_custom_call.1} parent=11 // pred_fallthru
          _
        // Predicated region
        $region17: #{tpu_custom_call.1} parent=11 // pred_check
          %p278 = pneg %p87
        $region18: #{tpu_custom_call.1} parent=11 // pred_check_branch
          %280 = sbr.rel (%p278) target = $region20
        $region19: #{tpu_custom_call.1} parent=11 // pred_region
          _
        $region20: #{tpu_custom_call.1} parent=11 // pred_fallthru
          _
        // Predicated region
        $region21: #{tpu_custom_call.1} parent=11 // pred_check
          %p281 = pneg %p108
        $region22: #{tpu_custom_call.1} parent=11 // pred_check_branch
          %283 = sbr.rel (%p281) target = $region24
        $region23: #{tpu_custom_call.1} parent=11 // pred_region
          _
        $region24: #{tpu_custom_call.1} parent=11 // pred_fallthru
          _
        // Predicated region
        $region25: #{tpu_custom_call.1} parent=11 // pred_check
          %p284 = pneg %p129
        $region26: #{tpu_custom_call.1} parent=11 // pred_check_branch
          %286 = sbr.rel (%p284) target = $region28
        $region27: #{tpu_custom_call.1} parent=11 // pred_region
          _
        $region28: #{tpu_custom_call.1} parent=11 // pred_fallthru
          _
        // Predicated region
        $region29: #{tpu_custom_call.1} parent=11 // pred_check
          %p287 = pneg %p150
        $region30: #{tpu_custom_call.1} parent=11 // pred_check_branch
          %289 = sbr.rel (%p287) target = $region32
        $region31: #{tpu_custom_call.1} parent=11 // pred_region
          _
        $region32: #{tpu_custom_call.1} parent=11 // pred_fallthru
          _
        // Predicated region
        $region33: #{tpu_custom_call.1} parent=11 // pred_check
          %p290 = pneg %p171
        $region34: #{tpu_custom_call.1} parent=11 // pred_check_branch
          %292 = sbr.rel (%p290) target = $region36
        $region35: #{tpu_custom_call.1} parent=11 // pred_region
          _
        $region36: #{tpu_custom_call.1} parent=11 // pred_fallthru
          _
        // Predicated region
        $region37: #{tpu_custom_call.1} parent=11 // pred_check
          %p293 = pneg %p192
        $region38: #{tpu_custom_call.1} parent=11 // pred_check_branch
          %295 = sbr.rel (%p293) target = $region40
        $region39: #{tpu_custom_call.1} parent=11 // pred_region
          _
        $region40: #{tpu_custom_call.1} parent=11 // pred_fallthru
          _
        // Predicated region
        $region41: #{tpu_custom_call.1} parent=11 // pred_check
          %p296 = pneg %p213
        $region42: #{tpu_custom_call.1} parent=11 // pred_check_branch
          %298 = sbr.rel (%p296) target = $region44
        $region43: #{tpu_custom_call.1} parent=11 // pred_region
          _
        $region44: #{tpu_custom_call.1} parent=11 // pred_fallthru
          _
        // Predicated region
        $region45: #{tpu_custom_call.1} parent=11 // pred_check
          %p299 = pneg %p234
        $region46: #{tpu_custom_call.1} parent=11 // pred_check_branch
          %301 = sbr.rel (%p299) target = $region48
        $region47: #{tpu_custom_call.1} parent=11 // pred_region
          _
        $region48: #{tpu_custom_call.1} parent=11 // pred_fallthru
          _
      $region12: #{tpu_custom_call.1} parent=5 // pred_fallthru
        _
      %p302 = scmp.lt.s32.totalorder %s19, 2
      // Predicated region
      $region49: #{tpu_custom_call.1} parent=5 // pred_check
        %p303 = pneg %p302
      $region50: #{tpu_custom_call.1} parent=5 // pred_check_branch
        %305 = sbr.rel (%p303) target = $region52
      $region51: #{tpu_custom_call.1} parent=5 // pred_region
        // Predicated region
        $region53: #{tpu_custom_call.1} parent=51 // pred_check
          %p306 = pneg %p39
        $region54: #{tpu_custom_call.1} parent=51 // pred_check_branch
          %308 = sbr.rel (%p306) target = $region56
        $region55: #{tpu_custom_call.1} parent=51 // pred_region
          %p309 = scmp.lt.s32.totalorder %s19, 1
          %s310 = scalar_select %p309, %s19, 1
          %s311 = smul.addr %s310, 8
          %s312 = scalar_lea.vmem %s0, %s311
        $region56: #{tpu_custom_call.1} parent=51 // pred_fallthru
          _
      $region52: #{tpu_custom_call.1} parent=5 // pred_fallthru
        _
      %p313 = scmp.le.s32.totalorder 1, %s19
      %p314 = scmp.lt.s32.totalorder %s19, 3
      %p315 = pnand %p313, %p314
      %p316 = pneg %p315
      // Predicated region
      $region57: #{tpu_custom_call.1} parent=5 // pred_check
        _
      $region58: #{tpu_custom_call.1} parent=5 // pred_check_branch
        %318 = sbr.rel (%p315) target = $region60
      $region59: #{tpu_custom_call.1} parent=5 // pred_region
        %s319 = ssub.s32 %s19, 1
        %p320 = scmp.lt.s32.totalorder %s24, 1
        %s321 = scalar_select %p320, %s24, 1
        %s322 = smul.addr %s321, 8
        %s323 = scalar_lea.vmem %s0, %s322
        %p324 = pneg %p45
        %p325 = pneg %p42
        %p326 = pneg %p66
        %p327 = pneg %p63
        %p328 = pneg %p87
        %p329 = pneg %p84
        %p330 = pneg %p108
        %p331 = pneg %p105
        %p332 = pneg %p129
        %p333 = pneg %p126
        %p334 = pneg %p150
        %p335 = pneg %p147
        %p336 = pneg %p171
        %p337 = pneg %p168
        %p338 = pneg %p192
        %p339 = pneg %p189
        %p340 = pneg %p213
        %p341 = pneg %p210
        %p342 = pneg %p234
        %p343 = pneg %p231
        %p344 = pneg %p260
        %p345 = pneg %p257
        %s346 = sand.u32 %s247, 1
        %s347 = scalar_lea.sflag [#allocation3], %s346
        %s348 = sand.u32 %s247, 1
        %s349 = smul.addr %s348, 8
        %s350 = scalar_lea.vmem [#allocation2], %s349
        %p351 = scmp.lt.s32.totalorder %s24, 1
        %s352 = scalar_select %p351, %s24, 1
        %s353 = smul.addr %s352, 8
        %s354 = scalar_lea.vmem %s0, %s353
        %v355 = vld [vmem:[%s354] sm:$0xff]
        %v356 = vlaneseq
        %v357 = vshrl.u32 %v356, 7
        %v358 = vsub.s32 0, %v357
        %v359 = vrot.slane %v355, %v358
        %361 = vbcast.lane.b32.xlu0 %v359, 256
        %v362 = vpop.permute.xlu0 %361
        %s364 = sor.u32 256, 8
        %365 = vbcast.lane.b32.xlu0 %v359, %s364
        %v366 = vpop.permute.xlu0 %365
        %s368 = sor.u32 256, 16
        %369 = vbcast.lane.b32.xlu0 %v359, %s368
        %v370 = vpop.permute.xlu0 %369
        %s372 = sor.u32 256, 24
        %373 = vbcast.lane.b32.xlu0 %v359, %s372
        %v374 = vpop.permute.xlu0 %373
        %v375 = vlaneseq
        %v376 = vshrl.u32 %v375, 7
        %v377 = vsub.s32 1, %v376
        %v378 = vrot.slane %v355, %v377
        %380 = vbcast.lane.b32.xlu0 %v378, 256
        %v381 = vpop.permute.xlu0 %380
        %s383 = sor.u32 256, 8
        %384 = vbcast.lane.b32.xlu0 %v378, %s383
        %v385 = vpop.permute.xlu0 %384
        %s387 = sor.u32 256, 16
        %388 = vbcast.lane.b32.xlu0 %v378, %s387
        %v389 = vpop.permute.xlu0 %388
        %s391 = sor.u32 256, 24
        %392 = vbcast.lane.b32.xlu0 %v378, %s391
        %v393 = vpop.permute.xlu0 %392
        %v394 = vlaneseq
        %v395 = vshrl.u32 %v394, 7
        %v396 = vsub.s32 2, %v395
        %v397 = vrot.slane %v355, %v396
        %399 = vbcast.lane.b32.xlu0 %v397, 256
        %v400 = vpop.permute.xlu0 %399
        %s402 = sor.u32 256, 8
        %403 = vbcast.lane.b32.xlu0 %v397, %s402
        %v404 = vpop.permute.xlu0 %403
        %s406 = sor.u32 256, 16
        %407 = vbcast.lane.b32.xlu0 %v397, %s406
        %v408 = vpop.permute.xlu0 %407
        %s410 = sor.u32 256, 24
        %411 = vbcast.lane.b32.xlu0 %v397, %s410
        %v412 = vpop.permute.xlu0 %411
        %v413 = vlaneseq
        %v414 = vshrl.u32 %v413, 7
        %v415 = vsub.s32 3, %v414
        %v416 = vrot.slane %v355, %v415
        %418 = vbcast.lane.b32.xlu0 %v416, 256
        %v419 = vpop.permute.xlu0 %418
        %s421 = sor.u32 256, 8
        %422 = vbcast.lane.b32.xlu0 %v416, %s421
        %v423 = vpop.permute.xlu0 %422
        %s425 = sor.u32 256, 16
        %426 = vbcast.lane.b32.xlu0 %v416, %s425
        %v427 = vpop.permute.xlu0 %426
        %s429 = sor.u32 256, 24
        %430 = vbcast.lane.b32.xlu0 %v416, %s429
        %v431 = vpop.permute.xlu0 %430
        %v432 = vlaneseq
        %v433 = vshrl.u32 %v432, 7
        %v434 = vsub.s32 4, %v433
        %v435 = vrot.slane %v355, %v434
        %437 = vbcast.lane.b32.xlu0 %v435, 256
        %v438 = vpop.permute.xlu0 %437
        %s440 = sor.u32 256, 8
        %441 = vbcast.lane.b32.xlu0 %v435, %s440
        %v442 = vpop.permute.xlu0 %441
        %s444 = sor.u32 256, 16
        %445 = vbcast.lane.b32.xlu0 %v435, %s444
        %v446 = vpop.permute.xlu0 %445
        %s448 = sor.u32 256, 24
        %449 = vbcast.lane.b32.xlu0 %v435, %s448
        %v450 = vpop.permute.xlu0 %449
        %v451 = vlaneseq
        %v452 = vshrl.u32 %v451, 7
        %v453 = vsub.s32 5, %v452
        %v454 = vrot.slane %v355, %v453
        %456 = vbcast.lane.b32.xlu0 %v454, 256
        %v457 = vpop.permute.xlu0 %456
        %s459 = sor.u32 256, 8
        %460 = vbcast.lane.b32.xlu0 %v454, %s459
        %v461 = vpop.permute.xlu0 %460
        %s463 = sor.u32 256, 16
        %464 = vbcast.lane.b32.xlu0 %v454, %s463
        %v465 = vpop.permute.xlu0 %464
        %s467 = sor.u32 256, 24
        %468 = vbcast.lane.b32.xlu0 %v454, %s467
        %v469 = vpop.permute.xlu0 %468
        %v470 = vlaneseq
        %v471 = vshrl.u32 %v470, 7
        %v472 = vsub.s32 6, %v471
        %v473 = vrot.slane %v355, %v472
        %475 = vbcast.lane.b32.xlu0 %v473, 256
        %v476 = vpop.permute.xlu0 %475
        %s478 = sor.u32 256, 8
        %479 = vbcast.lane.b32.xlu0 %v473, %s478
        %v480 = vpop.permute.xlu0 %479
        %s482 = sor.u32 256, 16
        %483 = vbcast.lane.b32.xlu0 %v473, %s482
        %v484 = vpop.permute.xlu0 %483
        %s486 = sor.u32 256, 24
        %487 = vbcast.lane.b32.xlu0 %v473, %s486
        %v488 = vpop.permute.xlu0 %487
        %v489 = vlaneseq
        %v490 = vshrl.u32 %v489, 7
        %v491 = vsub.s32 7, %v490
        %v492 = vrot.slane %v355, %v491
        %494 = vbcast.lane.b32.xlu0 %v492, 256
        %v495 = vpop.permute.xlu0 %494
        %s497 = sor.u32 256, 8
        %498 = vbcast.lane.b32.xlu0 %v492, %s497
        %v499 = vpop.permute.xlu0 %498
        %s501 = sor.u32 256, 16
        %502 = vbcast.lane.b32.xlu0 %v492, %s501
        %v503 = vpop.permute.xlu0 %502
        %s505 = sor.u32 256, 24
        %506 = vbcast.lane.b32.xlu0 %v492, %s505
        %v507 = vpop.permute.xlu0 %506
        %v508 = vlaneseq
        %v509 = vand.u32 %v508, 127
        %vm510 = vcmp.eq.s32.totalorder %v362, %v509
        %vm511 = vcmp.eq.s32.totalorder %v366, %v509
        %vm512 = vcmp.eq.s32.totalorder %v370, %v509
        %vm513 = vcmp.eq.s32.totalorder %v374, %v509
        %vm514 = vcmp.eq.s32.totalorder %v381, %v509
        %vm515 = vcmp.eq.s32.totalorder %v385, %v509
        %vm516 = vcmp.eq.s32.totalorder %v389, %v509
        %vm517 = vcmp.eq.s32.totalorder %v393, %v509
        %vm518 = vcmp.eq.s32.totalorder %v400, %v509
        %vm519 = vcmp.eq.s32.totalorder %v404, %v509
        %vm520 = vcmp.eq.s32.totalorder %v408, %v509
        %vm521 = vcmp.eq.s32.totalorder %v412, %v509
        %vm522 = vcmp.eq.s32.totalorder %v419, %v509
        %vm523 = vcmp.eq.s32.totalorder %v423, %v509
        %vm524 = vcmp.eq.s32.totalorder %v427, %v509
        %vm525 = vcmp.eq.s32.totalorder %v431, %v509
        %vm526 = vcmp.eq.s32.totalorder %v438, %v509
        %vm527 = vcmp.eq.s32.totalorder %v442, %v509
        %vm528 = vcmp.eq.s32.totalorder %v446, %v509
        %vm529 = vcmp.eq.s32.totalorder %v450, %v509
        %vm530 = vcmp.eq.s32.totalorder %v457, %v509
        %vm531 = vcmp.eq.s32.totalorder %v461, %v509
        %vm532 = vcmp.eq.s32.totalorder %v465, %v509
        %vm533 = vcmp.eq.s32.totalorder %v469, %v509
        %vm534 = vcmp.eq.s32.totalorder %v476, %v509
        %vm535 = vcmp.eq.s32.totalorder %v480, %v509
        %vm536 = vcmp.eq.s32.totalorder %v484, %v509
        %vm537 = vcmp.eq.s32.totalorder %v488, %v509
        %vm538 = vcmp.eq.s32.totalorder %v495, %v509
        %vm539 = vcmp.eq.s32.totalorder %v499, %v509
        %vm540 = vcmp.eq.s32.totalorder %v503, %v509
        %vm541 = vcmp.eq.s32.totalorder %v507, %v509
        %v542 = vsel %vm510, 1, 0
        %v543 = vsel %vm511, 1, 0
        %v544 = vsel %vm512, 1, 0
        %v545 = vsel %vm513, 1, 0
        %v546 = vsel %vm514, 1, 0
        %v547 = vsel %vm515, 1, 0
        %v548 = vsel %vm516, 1, 0
        %v549 = vsel %vm517, 1, 0
        %v550 = vsel %vm518, 1, 0
        %v551 = vsel %vm519, 1, 0
        %v552 = vsel %vm520, 1, 0
        %v553 = vsel %vm521, 1, 0
        %v554 = vsel %vm522, 1, 0
        %v555 = vsel %vm523, 1, 0
        %v556 = vsel %vm524, 1, 0
        %v557 = vsel %vm525, 1, 0
        %v558 = vsel %vm526, 1, 0
        %v559 = vsel %vm527, 1, 0
        %v560 = vsel %vm528, 1, 0
        %v561 = vsel %vm529, 1, 0
        %v562 = vsel %vm530, 1, 0
        %v563 = vsel %vm531, 1, 0
        %v564 = vsel %vm532, 1, 0
        %v565 = vsel %vm533, 1, 0
        %v566 = vsel %vm534, 1, 0
        %v567 = vsel %vm535, 1, 0
        %v568 = vsel %vm536, 1, 0
        %v569 = vsel %vm537, 1, 0
        %v570 = vsel %vm538, 1, 0
        %v571 = vsel %vm539, 1, 0
        %v572 = vsel %vm540, 1, 0
        %v573 = vsel %vm541, 1, 0
        %v574 = vcvt.s32.f32 %v542
        %v575 = vcvt.s32.f32 %v543
        %v576 = vcvt.s32.f32 %v544
        %v577 = vcvt.s32.f32 %v545
        %v578 = vcvt.s32.f32 %v546
        %v579 = vcvt.s32.f32 %v547
        %v580 = vcvt.s32.f32 %v548
        %v581 = vcvt.s32.f32 %v549
        %v582 = vcvt.s32.f32 %v550
        %v583 = vcvt.s32.f32 %v551
        %v584 = vcvt.s32.f32 %v552
        %v585 = vcvt.s32.f32 %v553
        %v586 = vcvt.s32.f32 %v554
        %v587 = vcvt.s32.f32 %v555
        %v588 = vcvt.s32.f32 %v556
        %v589 = vcvt.s32.f32 %v557
        %v590 = vcvt.s32.f32 %v558
        %v591 = vcvt.s32.f32 %v559
        %v592 = vcvt.s32.f32 %v560
        %v593 = vcvt.s32.f32 %v561
        %v594 = vcvt.s32.f32 %v562
        %v595 = vcvt.s32.f32 %v563
        %v596 = vcvt.s32.f32 %v564
        %v597 = vcvt.s32.f32 %v565
        %v598 = vcvt.s32.f32 %v566
        %v599 = vcvt.s32.f32 %v567
        %v600 = vcvt.s32.f32 %v568
        %v601 = vcvt.s32.f32 %v569
        %v602 = vcvt.s32.f32 %v570
        %v603 = vcvt.s32.f32 %v571
        %v604 = vcvt.s32.f32 %v572
        %v605 = vcvt.s32.f32 %v573
        %v606 = vld [vmem:[%s1] sm:$0xff]
        %v607 = vld [vmem:[%s1 + $0x8] sm:$0xff]
        %v608 = vld [vmem:[%s1 + $0x10] sm:$0xff]
        %v609 = vld [vmem:[%s1 + $0x18] sm:$0xff]
        %vm610 = vcmask 261120
        %v612 = vsel %vm610, %v574, 0
        %v615 = vsel %vm610, %v575, 0
        %v618 = vsel %vm610, %v576, 0
        %v621 = vsel %vm610, %v577, 0
        %v624 = vsel %vm610, %v578, 0
        %v627 = vsel %vm610, %v579, 0
        %v630 = vsel %vm610, %v580, 0
        %v633 = vsel %vm610, %v581, 0
        %v636 = vsel %vm610, %v582, 0
        %v639 = vsel %vm610, %v583, 0
        %v642 = vsel %vm610, %v584, 0
        %v645 = vsel %vm610, %v585, 0
        %v648 = vsel %vm610, %v586, 0
        %v651 = vsel %vm610, %v587, 0
        %v654 = vsel %vm610, %v588, 0
        %v657 = vsel %vm610, %v589, 0
        %v660 = vsel %vm610, %v590, 0
        %v663 = vsel %vm610, %v591, 0
        %v666 = vsel %vm610, %v592, 0
        %v669 = vsel %vm610, %v593, 0
        %v672 = vsel %vm610, %v594, 0
        %v675 = vsel %vm610, %v595, 0
        %v678 = vsel %vm610, %v596, 0
        %v681 = vsel %vm610, %v597, 0
        %v684 = vsel %vm610, %v598, 0
        %v687 = vsel %vm610, %v599, 0
        %v690 = vsel %vm610, %v600, 0
        %v693 = vsel %vm610, %v601, 0
        %v696 = vsel %vm610, %v602, 0
        %v699 = vsel %vm610, %v603, 0
        %v702 = vsel %vm610, %v604, 0
        %v705 = vsel %vm610, %v605, 0
        %707 = vmatprep.subr.mxu0 0.0
        %708 = vmatpush1.msra.mxu0 %v606
        %709 = vmatprep.subr.mxu0 0.0
        %710 = vmatpush1.msra.mxu0 %v607
        %711 = vmatprep.subr.mxu0 0.0
        %712 = vmatpush1.msra.mxu0 %v608
        %713 = vmatprep.subr.mxu0 0.0
        %714 = vmatpush1.msra.mxu0 %v609
        %715 = vmatprep.subr.mxu0 0.0
        %716 = vmatpush1.msra.mxu0 0.0
        %717 = vmatprep.subr.mxu0 0.0
        %718 = vmatpush1.msra.mxu0 0.0
        %719 = vmatprep.subr.mxu0 0.0
        %720 = vmatpush1.msra.mxu0 0.0
        %721 = vmatprep.subr.mxu0 0.0
        %722 = vmatpush1.msra.mxu0 0.0
        %723 = vmatprep.subr.mxu0 0.0
        %724 = vmatpush1.msra.mxu0 0.0
        %725 = vmatprep.subr.mxu0 0.0
        %726 = vmatpush1.msra.mxu0 0.0
        %727 = vmatprep.subr.mxu0 0.0
        %728 = vmatpush1.msra.mxu0 0.0
        %729 = vmatprep.subr.mxu0 0.0
        %730 = vmatpush1.msra.mxu0 0.0
        %731 = vmatprep.subr.mxu0 0.0
        %732 = vmatpush1.msra.mxu0 0.0
        %733 = vmatprep.subr.mxu0 0.0
        %734 = vmatpush1.msra.mxu0 0.0
        %735 = vmatprep.subr.mxu0 0.0
        %736 = vmatpush1.msra.mxu0 0.0
        %737 = vmatprep.subr.mxu0 0.0
        %738 = vmatpush1.msra.mxu0 0.0
        %739 = vmatprep.subr.mxu0 0.0
        %740 = vmatpush1.msra.mxu0 0.0
        %741 = vmatprep.subr.mxu0 0.0
        %742 = vmatpush1.msra.mxu0 0.0
        %743 = vmatprep.subr.mxu0 0.0
        %744 = vmatpush1.msra.mxu0 0.0
        %745 = vmatprep.subr.mxu0 0.0
        %746 = vmatpush1.msra.mxu0 0.0
        %747 = vmatprep.subr.mxu0 0.0
        %748 = vmatpush1.msra.mxu0 0.0
        %749 = vmatprep.subr.mxu0 0.0
        %750 = vmatpush1.msra.mxu0 0.0
        %751 = vmatprep.subr.mxu0 0.0
        %752 = vmatpush1.msra.mxu0 0.0
        %753 = vmatprep.subr.mxu0 0.0
        %754 = vmatpush1.msra.mxu0 0.0
        %755 = vmatprep.subr.mxu0 0.0
        %756 = vmatpush1.msra.mxu0 0.0
        %757 = vmatprep.subr.mxu0 0.0
        %758 = vmatpush1.msra.mxu0 0.0
        %759 = vmatprep.subr.mxu0 0.0
        %760 = vmatpush1.msra.mxu0 0.0
        %761 = vmatprep.subr.mxu0 0.0
        %762 = vmatpush1.msra.mxu0 0.0
        %763 = vmatprep.subr.mxu0 0.0
        %764 = vmatpush1.msra.mxu0 0.0
        %765 = vmatprep.subr.mxu0 0.0
        %766 = vmatpush1.msra.mxu0 0.0
        %767 = vmatprep.subr.mxu0 0.0
        %768 = vmatpush1.msra.mxu0 0.0
        %769 = vmatprep.subr.mxu0 0.0
        %770 = vmatpush1.msra.mxu0 0.0
        %771 = vmatprep.mubr.f32.mxu0 0.0
        %772 = vmatmul.mubr.f32.gmra.mrb[0].mxu0 %v612
        %v773 = vpop.f32.mrb[0].mxu0
        %v774 = vadd.f32 0.0, %v773
        %v775 = vpop.f32.mrb[0].mxu0
        %776 = vmatprep.mubr.f32.mxu0 0.0
        %777 = vmatmul.mubr.f32.gmra.mrb[0].mxu0 %v615
        %v778 = vpop.f32.mrb[0].mxu0
        %v779 = vadd.f32 0.0, %v778
        %v780 = vpop.f32.mrb[0].mxu0
        %781 = vmatprep.mubr.f32.mxu0 0.0
        %782 = vmatmul.mubr.f32.gmra.mrb[0].mxu0 %v618
        %v783 = vpop.f32.mrb[0].mxu0
        %v784 = vadd.f32 0.0, %v783
        %v785 = vpop.f32.mrb[0].mxu0
        %786 = vmatprep.mubr.f32.mxu0 0.0
        %787 = vmatmul.mubr.f32.gmra.mrb[0].mxu0 %v621
        %v788 = vpop.f32.mrb[0].mxu0
        %v789 = vadd.f32 0.0, %v788
        %v790 = vpop.f32.mrb[0].mxu0
        %791 = vmatprep.mubr.f32.mxu0 0.0
        %792 = vmatmul.mubr.f32.gmra.mrb[0].mxu0 %v624
        %v793 = vpop.f32.mrb[0].mxu0
        %v794 = vadd.f32 0.0, %v793
        %v795 = vpop.f32.mrb[0].mxu0
        %796 = vmatprep.mubr.f32.mxu0 0.0
        %797 = vmatmul.mubr.f32.gmra.mrb[0].mxu0 %v627
        %v798 = vpop.f32.mrb[0].mxu0
        %v799 = vadd.f32 0.0, %v798
        %v800 = vpop.f32.mrb[0].mxu0
        %801 = vmatprep.mubr.f32.mxu0 0.0
        %802 = vmatmul.mubr.f32.gmra.mrb[0].mxu0 %v630
        %v803 = vpop.f32.mrb[0].mxu0
        %v804 = vadd.f32 0.0, %v803
        %v805 = vpop.f32.mrb[0].mxu0
        %806 = vmatprep.mubr.f32.mxu0 0.0
        %807 = vmatmul.mubr.f32.gmra.mrb[0].mxu0 %v633
        %v808 = vpop.f32.mrb[0].mxu0
        %v809 = vadd.f32 0.0, %v808
        %v810 = vpop.f32.mrb[0].mxu0
        %811 = vmatprep.mubr.f32.mxu0 0.0
        %812 = vmatmul.mubr.f32.gmra.mrb[0].mxu0 %v636
        %v813 = vpop.f32.mrb[0].mxu0
        %v814 = vadd.f32 0.0, %v813
        %v815 = vpop.f32.mrb[0].mxu0
        %816 = vmatprep.mubr.f32.mxu0 0.0
        %817 = vmatmul.mubr.f32.gmra.mrb[0].mxu0 %v639
        %v818 = vpop.f32.mrb[0].mxu0
        %v819 = vadd.f32 0.0, %v818
        %v820 = vpop.f32.mrb[0].mxu0
        %821 = vmatprep.mubr.f32.mxu0 0.0
        %822 = vmatmul.mubr.f32.gmra.mrb[0].mxu0 %v642
        %v823 = vpop.f32.mrb[0].mxu0
        %v824 = vadd.f32 0.0, %v823
        %v825 = vpop.f32.mrb[0].mxu0
        %826 = vmatprep.mubr.f32.mxu0 0.0
        %827 = vmatmul.mubr.f32.gmra.mrb[0].mxu0 %v645
        %v828 = vpop.f32.mrb[0].mxu0
        %v829 = vadd.f32 0.0, %v828
        %v830 = vpop.f32.mrb[0].mxu0
        %831 = vmatprep.mubr.f32.mxu0 0.0
        %832 = vmatmul.mubr.f32.gmra.mrb[0].mxu0 %v648
        %v833 = vpop.f32.mrb[0].mxu0
        %v834 = vadd.f32 0.0, %v833
        %v835 = vpop.f32.mrb[0].mxu0
        %836 = vmatprep.mubr.f32.mxu0 0.0
        %837 = vmatmul.mubr.f32.gmra.mrb[0].mxu0 %v651
        %v838 = vpop.f32.mrb[0].mxu0
        %v839 = vadd.f32 0.0, %v838
        %v840 = vpop.f32.mrb[0].mxu0
        %841 = vmatprep.mubr.f32.mxu0 0.0
        %842 = vmatmul.mubr.f32.gmra.mrb[0].mxu0 %v654
        %v843 = vpop.f32.mrb[0].mxu0
        %v844 = vadd.f32 0.0, %v843
        %v845 = vpop.f32.mrb[0].mxu0
        %846 = vmatprep.mubr.f32.mxu0 0.0
        %847 = vmatmul.mubr.f32.gmra.mrb[0].mxu0 %v657
        %v848 = vpop.f32.mrb[0].mxu0
        %v849 = vadd.f32 0.0, %v848
        %v850 = vpop.f32.mrb[0].mxu0
        %851 = vmatprep.mubr.f32.mxu0 0.0
        %852 = vmatmul.mubr.f32.gmra.mrb[0].mxu0 %v660
        %v853 = vpop.f32.mrb[0].mxu0
        %v854 = vadd.f32 0.0, %v853
        %v855 = vpop.f32.mrb[0].mxu0
        %856 = vmatprep.mubr.f32.mxu0 0.0
        %857 = vmatmul.mubr.f32.gmra.mrb[0].mxu0 %v663
        %v858 = vpop.f32.mrb[0].mxu0
        %v859 = vadd.f32 0.0, %v858
        %v860 = vpop.f32.mrb[0].mxu0
        %861 = vmatprep.mubr.f32.mxu0 0.0
        %862 = vmatmul.mubr.f32.gmra.mrb[0].mxu0 %v666
        %v863 = vpop.f32.mrb[0].mxu0
        %v864 = vadd.f32 0.0, %v863
        %v865 = vpop.f32.mrb[0].mxu0
        %866 = vmatprep.mubr.f32.mxu0 0.0
        %867 = vmatmul.mubr.f32.gmra.mrb[0].mxu0 %v669
        %v868 = vpop.f32.mrb[0].mxu0
        %v869 = vadd.f32 0.0, %v868
        %v870 = vpop.f32.mrb[0].mxu0
        %871 = vmatprep.mubr.f32.mxu0 0.0
        %872 = vmatmul.mubr.f32.gmra.mrb[0].mxu0 %v672
        %v873 = vpop.f32.mrb[0].mxu0
        %v874 = vadd.f32 0.0, %v873
        %v875 = vpop.f32.mrb[0].mxu0
        %876 = vmatprep.mubr.f32.mxu0 0.0
        %877 = vmatmul.mubr.f32.gmra.mrb[0].mxu0 %v675
        %v878 = vpop.f32.mrb[0].mxu0
        %v879 = vadd.f32 0.0, %v878
        %v880 = vpop.f32.mrb[0].mxu0
        %881 = vmatprep.mubr.f32.mxu0 0.0
        %882 = vmatmul.mubr.f32.gmra.mrb[0].mxu0 %v678
        %v883 = vpop.f32.mrb[0].mxu0
        %v884 = vadd.f32 0.0, %v883
        %v885 = vpop.f32.mrb[0].mxu0
        %886 = vmatprep.mubr.f32.mxu0 0.0
        %887 = vmatmul.mubr.f32.gmra.mrb[0].mxu0 %v681
        %v888 = vpop.f32.mrb[0].mxu0
        %v889 = vadd.f32 0.0, %v888
        %v890 = vpop.f32.mrb[0].mxu0
        %891 = vmatprep.mubr.f32.mxu0 0.0
        %892 = vmatmul.mubr.f32.gmra.mrb[0].mxu0 %v684
        %v893 = vpop.f32.mrb[0].mxu0
        %v894 = vadd.f32 0.0, %v893
        %v895 = vpop.f32.mrb[0].mxu0
        %896 = vmatprep.mubr.f32.mxu0 0.0
        %897 = vmatmul.mubr.f32.gmra.mrb[0].mxu0 %v687
        %v898 = vpop.f32.mrb[0].mxu0
        %v899 = vadd.f32 0.0, %v898
        %v900 = vpop.f32.mrb[0].mxu0
        %901 = vmatprep.mubr.f32.mxu0 0.0
        %902 = vmatmul.mubr.f32.gmra.mrb[0].mxu0 %v690
        %v903 = vpop.f32.mrb[0].mxu0
        %v904 = vadd.f32 0.0, %v903
        %v905 = vpop.f32.mrb[0].mxu0
        %906 = vmatprep.mubr.f32.mxu0 0.0
        %907 = vmatmul.mubr.f32.gmra.mrb[0].mxu0 %v693
        %v908 = vpop.f32.mrb[0].mxu0
        %v909 = vadd.f32 0.0, %v908
        %v910 = vpop.f32.mrb[0].mxu0
        %911 = vmatprep.mubr.f32.mxu0 0.0
        %912 = vmatmul.mubr.f32.gmra.mrb[0].mxu0 %v696
        %v913 = vpop.f32.mrb[0].mxu0
        %v914 = vadd.f32 0.0, %v913
        %v915 = vpop.f32.mrb[0].mxu0
        %916 = vmatprep.mubr.f32.mxu0 0.0
        %917 = vmatmul.mubr.f32.gmra.mrb[0].mxu0 %v699
        %v918 = vpop.f32.mrb[0].mxu0
        %v919 = vadd.f32 0.0, %v918
        %v920 = vpop.f32.mrb[0].mxu0
        %921 = vmatprep.mubr.f32.mxu0 0.0
        %922 = vmatmul.mubr.f32.gmra.mrb[0].mxu0 %v702
        %v923 = vpop.f32.mrb[0].mxu0
        %v924 = vadd.f32 0.0, %v923
        %v925 = vpop.f32.mrb[0].mxu0
        %926 = vmatprep.mubr.f32.mxu0 0.0
        %927 = vmatmul.mubr.f32.gmra.mrb[0].mxu0 %v705
        %v928 = vpop.f32.mrb[0].mxu0
        %v929 = vadd.f32 0.0, %v928
        %v930 = vpop.f32.mrb[0].mxu0
        %931 = vdwg.mxu0
        %vm964 = vcmask 1041408
        %v965 = vrot.slane %v774, 6
        %v966 = vrot.slane %v779, 6
        %v967 = vsel %vm964, %v965, %v966
        %v968 = vrot.slane %v784, 6
        %v969 = vsel %vm964, %v966, %v968
        %v970 = vrot.slane %v789, 6
        %v971 = vsel %vm964, %v968, %v970
        %v972 = vrot.slane %v794, 6
        %v973 = vrot.slane %v799, 6
        %v974 = vsel %vm964, %v972, %v973
        %v975 = vrot.slane %v804, 6
        %v976 = vsel %vm964, %v973, %v975
        %v977 = vrot.slane %v809, 6
        %v978 = vsel %vm964, %v975, %v977
        %v979 = vrot.slane %v814, 6
        %v980 = vrot.slane %v819, 6
        %v981 = vsel %vm964, %v979, %v980
        %v982 = vrot.slane %v824, 6
        %v983 = vsel %vm964, %v980, %v982
        %v984 = vrot.slane %v829, 6
        %v985 = vsel %vm964, %v982, %v984
        %v986 = vrot.slane %v834, 6
        %v987 = vrot.slane %v839, 6
        %v988 = vsel %vm964, %v986, %v987
        %v989 = vrot.slane %v844, 6
        %v990 = vsel %vm964, %v987, %v989
        %v991 = vrot.slane %v849, 6
        %v992 = vsel %vm964, %v989, %v991
        %v993 = vrot.slane %v854, 6
        %v994 = vrot.slane %v859, 6
        %v995 = vsel %vm964, %v993, %v994
        %v996 = vrot.slane %v864, 6
        %v997 = vsel %vm964, %v994, %v996
        %v998 = vrot.slane %v869, 6
        %v999 = vsel %vm964, %v996, %v998
        %v1000 = vrot.slane %v874, 6
        %v1001 = vrot.slane %v879, 6
        %v1002 = vsel %vm964, %v1000, %v1001
        %v1003 = vrot.slane %v884, 6
        %v1004 = vsel %vm964, %v1001, %v1003
        %v1005 = vrot.slane %v889, 6
        %v1006 = vsel %vm964, %v1003, %v1005
        %v1007 = vrot.slane %v894, 6
        %v1008 = vrot.slane %v899, 6
        %v1009 = vsel %vm964, %v1007, %v1008
        %v1010 = vrot.slane %v904, 6
        %v1011 = vsel %vm964, %v1008, %v1010
        %v1012 = vrot.slane %v909, 6
        %v1013 = vsel %vm964, %v1010, %v1012
        %v1014 = vrot.slane %v914, 6
        %v1015 = vrot.slane %v919, 6
        %v1016 = vsel %vm964, %v1014, %v1015
        %v1017 = vrot.slane %v924, 6
        %v1018 = vsel %vm964, %v1015, %v1017
        %v1019 = vrot.slane %v929, 6
        %v1020 = vsel %vm964, %v1017, %v1019
        %v1053 = vsel %vm964, 0.0, %v965
        %v1054 = vsel %vm964, 0.0, %v972
        %v1055 = vsel %vm964, 0.0, %v979
        %v1056 = vsel %vm964, 0.0, %v986
        %v1057 = vsel %vm964, 0.0, %v993
        %v1058 = vsel %vm964, 0.0, %v1000
        %v1059 = vsel %vm964, 0.0, %v1007
        %v1060 = vsel %vm964, 0.0, %v1014
        %vm1069 = vcmask 1046528
        %v1070 = vrot.slane %v1053, 1
        %v1071 = vrot.slane %v967, 1
        %v1072 = vsel %vm1069, %v1070, %v1071
        %v1073 = vrot.slane %v969, 1
        %v1074 = vsel %vm1069, %v1071, %v1073
        %v1075 = vrot.slane %v971, 1
        %v1076 = vsel %vm1069, %v1073, %v1075
        %v1077 = vrot.slane %v970, 1
        %v1078 = vsel %vm1069, %v1075, %v1077
        %v1079 = vrot.slane %v1054, 1
        %v1080 = vrot.slane %v974, 1
        %v1081 = vsel %vm1069, %v1079, %v1080
        %v1082 = vrot.slane %v976, 1
        %v1083 = vsel %vm1069, %v1080, %v1082
        %v1084 = vrot.slane %v978, 1
        %v1085 = vsel %vm1069, %v1082, %v1084
        %v1086 = vrot.slane %v977, 1
        %v1087 = vsel %vm1069, %v1084, %v1086
        %v1088 = vrot.slane %v1055, 1
        %v1089 = vrot.slane %v981, 1
        %v1090 = vsel %vm1069, %v1088, %v1089
        %v1091 = vrot.slane %v983, 1
        %v1092 = vsel %vm1069, %v1089, %v1091
        %v1093 = vrot.slane %v985, 1
        %v1094 = vsel %vm1069, %v1091, %v1093
        %v1095 = vrot.slane %v984, 1
        %v1096 = vsel %vm1069, %v1093, %v1095
        %v1097 = vrot.slane %v1056, 1
        %v1098 = vrot.slane %v988, 1
        %v1099 = vsel %vm1069, %v1097, %v1098
        %v1100 = vrot.slane %v990, 1
        %v1101 = vsel %vm1069, %v1098, %v1100
        %v1102 = vrot.slane %v992, 1
        %v1103 = vsel %vm1069, %v1100, %v1102
        %v1104 = vrot.slane %v991, 1
        %v1105 = vsel %vm1069, %v1102, %v1104
        %v1106 = vrot.slane %v1057, 1
        %v1107 = vrot.slane %v995, 1
        %v1108 = vsel %vm1069, %v1106, %v1107
        %v1109 = vrot.slane %v997, 1
        %v1110 = vsel %vm1069, %v1107, %v1109
        %v1111 = vrot.slane %v999, 1
        %v1112 = vsel %vm1069, %v1109, %v1111
        %v1113 = vrot.slane %v998, 1
        %v1114 = vsel %vm1069, %v1111, %v1113
        %v1115 = vrot.slane %v1058, 1
        %v1116 = vrot.slane %v1002, 1
        %v1117 = vsel %vm1069, %v1115, %v1116
        %v1118 = vrot.slane %v1004, 1
        %v1119 = vsel %vm1069, %v1116, %v1118
        %v1120 = vrot.slane %v1006, 1
        %v1121 = vsel %vm1069, %v1118, %v1120
        %v1122 = vrot.slane %v1005, 1
        %v1123 = vsel %vm1069, %v1120, %v1122
        %v1124 = vrot.slane %v1059, 1
        %v1125 = vrot.slane %v1009, 1
        %v1126 = vsel %vm1069, %v1124, %v1125
        %v1127 = vrot.slane %v1011, 1
        %v1128 = vsel %vm1069, %v1125, %v1127
        %v1129 = vrot.slane %v1013, 1
        %v1130 = vsel %vm1069, %v1127, %v1129
        %v1131 = vrot.slane %v1012, 1
        %v1132 = vsel %vm1069, %v1129, %v1131
        %v1133 = vrot.slane %v1060, 1
        %v1134 = vrot.slane %v1016, 1
        %v1135 = vsel %vm1069, %v1133, %v1134
        %v1136 = vrot.slane %v1018, 1
        %v1137 = vsel %vm1069, %v1134, %v1136
        %v1138 = vrot.slane %v1020, 1
        %v1139 = vsel %vm1069, %v1136, %v1138
        %v1140 = vrot.slane %v1019, 1
        %v1141 = vsel %vm1069, %v1138, %v1140
        %1142 = vrot.lane.b32.xlu0 %v1072, 16
        %v1143 = vpop.permute.xlu0 %1142
        %1144 = vrot.lane.b32.xlu0 %v1074, 16
        %v1145 = vpop.permute.xlu0 %1144
        %1146 = vrot.lane.b32.xlu0 %v1076, 16
        %v1147 = vpop.permute.xlu0 %1146
        %1148 = vrot.lane.b32.xlu0 %v1078, 16
        %v1149 = vpop.permute.xlu0 %1148
        %1150 = vrot.lane.b32.xlu0 %v1081, 16
        %v1151 = vpop.permute.xlu0 %1150
        %1152 = vrot.lane.b32.xlu0 %v1083, 16
        %v1153 = vpop.permute.xlu0 %1152
        %1154 = vrot.lane.b32.xlu0 %v1085, 16
        %v1155 = vpop.permute.xlu0 %1154
        %1156 = vrot.lane.b32.xlu0 %v1087, 16
        %v1157 = vpop.permute.xlu0 %1156
        %1158 = vrot.lane.b32.xlu0 %v1090, 16
        %v1159 = vpop.permute.xlu0 %1158
        %1160 = vrot.lane.b32.xlu0 %v1092, 16
        %v1161 = vpop.permute.xlu0 %1160
        %1162 = vrot.lane.b32.xlu0 %v1094, 16
        %v1163 = vpop.permute.xlu0 %1162
        %1164 = vrot.lane.b32.xlu0 %v1096, 16
        %v1165 = vpop.permute.xlu0 %1164
        %1166 = vrot.lane.b32.xlu0 %v1099, 16
        %v1167 = vpop.permute.xlu0 %1166
        %1168 = vrot.lane.b32.xlu0 %v1101, 16
        %v1169 = vpop.permute.xlu0 %1168
        %1170 = vrot.lane.b32.xlu0 %v1103, 16
        %v1171 = vpop.permute.xlu0 %1170
        %1172 = vrot.lane.b32.xlu0 %v1105, 16
        %v1173 = vpop.permute.xlu0 %1172
        %1174 = vrot.lane.b32.xlu0 %v1108, 16
        %v1175 = vpop.permute.xlu0 %1174
        %1176 = vrot.lane.b32.xlu0 %v1110, 16
        %v1177 = vpop.permute.xlu0 %1176
        %1178 = vrot.lane.b32.xlu0 %v1112, 16
        %v1179 = vpop.permute.xlu0 %1178
        %1180 = vrot.lane.b32.xlu0 %v1114, 16
        %v1181 = vpop.permute.xlu0 %1180
        %1182 = vrot.lane.b32.xlu0 %v1117, 16
        %v1183 = vpop.permute.xlu0 %1182
        %1184 = vrot.lane.b32.xlu0 %v1119, 16
        %v1185 = vpop.permute.xlu0 %1184
        %1186 = vrot.lane.b32.xlu0 %v1121, 16
        %v1187 = vpop.permute.xlu0 %1186
        %1188 = vrot.lane.b32.xlu0 %v1123, 16
        %v1189 = vpop.permute.xlu0 %1188
        %1190 = vrot.lane.b32.xlu0 %v1126, 16
        %v1191 = vpop.permute.xlu0 %1190
        %1192 = vrot.lane.b32.xlu0 %v1128, 16
        %v1193 = vpop.permute.xlu0 %1192
        %1194 = vrot.lane.b32.xlu0 %v1130, 16
        %v1195 = vpop.permute.xlu0 %1194
        %1196 = vrot.lane.b32.xlu0 %v1132, 16
        %v1197 = vpop.permute.xlu0 %1196
        %1198 = vrot.lane.b32.xlu0 %v1135, 16
        %v1199 = vpop.permute.xlu0 %1198
        %1200 = vrot.lane.b32.xlu0 %v1137, 16
        %v1201 = vpop.permute.xlu0 %1200
        %1202 = vrot.lane.b32.xlu0 %v1139, 16
        %v1203 = vpop.permute.xlu0 %1202
        %1204 = vrot.lane.b32.xlu0 %v1141, 16
        %v1205 = vpop.permute.xlu0 %1204
        %vm1238 = vcmask 1045504
        %v1239 = vrot.slane %v1053, 2
        %v1240 = vrot.slane %v967, 2
        %v1241 = vsel %vm1238, %v1239, %v1240
        %v1242 = vrot.slane %v969, 2
        %v1243 = vsel %vm1238, %v1240, %v1242
        %v1244 = vrot.slane %v971, 2
        %v1245 = vsel %vm1238, %v1242, %v1244
        %v1246 = vrot.slane %v970, 2
        %v1247 = vsel %vm1238, %v1244, %v1246
        %v1248 = vrot.slane %v1054, 2
        %v1249 = vrot.slane %v974, 2
        %v1250 = vsel %vm1238, %v1248, %v1249
        %v1251 = vrot.slane %v976, 2
        %v1252 = vsel %vm1238, %v1249, %v1251
        %v1253 = vrot.slane %v978, 2
        %v1254 = vsel %vm1238, %v1251, %v1253
        %v1255 = vrot.slane %v977, 2
        %v1256 = vsel %vm1238, %v1253, %v1255
        %v1257 = vrot.slane %v1055, 2
        %v1258 = vrot.slane %v981, 2
        %v1259 = vsel %vm1238, %v1257, %v1258
        %v1260 = vrot.slane %v983, 2
        %v1261 = vsel %vm1238, %v1258, %v1260
        %v1262 = vrot.slane %v985, 2
        %v1263 = vsel %vm1238, %v1260, %v1262
        %v1264 = vrot.slane %v984, 2
        %v1265 = vsel %vm1238, %v1262, %v1264
        %v1266 = vrot.slane %v1056, 2
        %v1267 = vrot.slane %v988, 2
        %v1268 = vsel %vm1238, %v1266, %v1267
        %v1269 = vrot.slane %v990, 2
        %v1270 = vsel %vm1238, %v1267, %v1269
        %v1271 = vrot.slane %v992, 2
        %v1272 = vsel %vm1238, %v1269, %v1271
        %v1273 = vrot.slane %v991, 2
        %v1274 = vsel %vm1238, %v1271, %v1273
        %v1275 = vrot.slane %v1057, 2
        %v1276 = vrot.slane %v995, 2
        %v1277 = vsel %vm1238, %v1275, %v1276
        %v1278 = vrot.slane %v997, 2
        %v1279 = vsel %vm1238, %v1276, %v1278
        %v1280 = vrot.slane %v999, 2
        %v1281 = vsel %vm1238, %v1278, %v1280
        %v1282 = vrot.slane %v998, 2
        %v1283 = vsel %vm1238, %v1280, %v1282
        %v1284 = vrot.slane %v1058, 2
        %v1285 = vrot.slane %v1002, 2
        %v1286 = vsel %vm1238, %v1284, %v1285
        %v1287 = vrot.slane %v1004, 2
        %v1288 = vsel %vm1238, %v1285, %v1287
        %v1289 = vrot.slane %v1006, 2
        %v1290 = vsel %vm1238, %v1287, %v1289
        %v1291 = vrot.slane %v1005, 2
        %v1292 = vsel %vm1238, %v1289, %v1291
        %v1293 = vrot.slane %v1059, 2
        %v1294 = vrot.slane %v1009, 2
        %v1295 = vsel %vm1238, %v1293, %v1294
        %v1296 = vrot.slane %v1011, 2
        %v1297 = vsel %vm1238, %v1294, %v1296
        %v1298 = vrot.slane %v1013, 2
        %v1299 = vsel %vm1238, %v1296, %v1298
        %v1300 = vrot.slane %v1012, 2
        %v1301 = vsel %vm1238, %v1298, %v1300
        %v1302 = vrot.slane %v1060, 2
        %v1303 = vrot.slane %v1016, 2
        %v1304 = vsel %vm1238, %v1302, %v1303
        %v1305 = vrot.slane %v1018, 2
        %v1306 = vsel %vm1238, %v1303, %v1305
        %v1307 = vrot.slane %v1020, 2
        %v1308 = vsel %vm1238, %v1305, %v1307
        %v1309 = vrot.slane %v1019, 2
        %v1310 = vsel %vm1238, %v1307, %v1309
        %1311 = vrot.lane.b32.xlu0 %v1241, 32
        %v1312 = vpop.permute.xlu0 %1311
        %1313 = vrot.lane.b32.xlu0 %v1243, 32
        %v1314 = vpop.permute.xlu0 %1313
        %1315 = vrot.lane.b32.xlu0 %v1245, 32
        %v1316 = vpop.permute.xlu0 %1315
        %1317 = vrot.lane.b32.xlu0 %v1247, 32
        %v1318 = vpop.permute.xlu0 %1317
        %1319 = vrot.lane.b32.xlu0 %v1250, 32
        %v1320 = vpop.permute.xlu0 %1319
        %1321 = vrot.lane.b32.xlu0 %v1252, 32
        %v1322 = vpop.permute.xlu0 %1321
        %1323 = vrot.lane.b32.xlu0 %v1254, 32
        %v1324 = vpop.permute.xlu0 %1323
        %1325 = vrot.lane.b32.xlu0 %v1256, 32
        %v1326 = vpop.permute.xlu0 %1325
        %1327 = vrot.lane.b32.xlu0 %v1259, 32
        %v1328 = vpop.permute.xlu0 %1327
        %1329 = vrot.lane.b32.xlu0 %v1261, 32
        %v1330 = vpop.permute.xlu0 %1329
        %1331 = vrot.lane.b32.xlu0 %v1263, 32
        %v1332 = vpop.permute.xlu0 %1331
        %1333 = vrot.lane.b32.xlu0 %v1265, 32
        %v1334 = vpop.permute.xlu0 %1333
        %1335 = vrot.lane.b32.xlu0 %v1268, 32
        %v1336 = vpop.permute.xlu0 %1335
        %1337 = vrot.lane.b32.xlu0 %v1270, 32
        %v1338 = vpop.permute.xlu0 %1337
        %1339 = vrot.lane.b32.xlu0 %v1272, 32
        %v1340 = vpop.permute.xlu0 %1339
        %1341 = vrot.lane.b32.xlu0 %v1274, 32
        %v1342 = vpop.permute.xlu0 %1341
        %1343 = vrot.lane.b32.xlu0 %v1277, 32
        %v1344 = vpop.permute.xlu0 %1343
        %1345 = vrot.lane.b32.xlu0 %v1279, 32
        %v1346 = vpop.permute.xlu0 %1345
        %1347 = vrot.lane.b32.xlu0 %v1281, 32
        %v1348 = vpop.permute.xlu0 %1347
        %1349 = vrot.lane.b32.xlu0 %v1283, 32
        %v1350 = vpop.permute.xlu0 %1349
        %1351 = vrot.lane.b32.xlu0 %v1286, 32
        %v1352 = vpop.permute.xlu0 %1351
        %1353 = vrot.lane.b32.xlu0 %v1288, 32
        %v1354 = vpop.permute.xlu0 %1353
        %1355 = vrot.lane.b32.xlu0 %v1290, 32
        %v1356 = vpop.permute.xlu0 %1355
        %1357 = vrot.lane.b32.xlu0 %v1292, 32
        %v1358 = vpop.permute.xlu0 %1357
        %1359 = vrot.lane.b32.xlu0 %v1295, 32
        %v1360 = vpop.permute.xlu0 %1359
        %1361 = vrot.lane.b32.xlu0 %v1297, 32
        %v1362 = vpop.permute.xlu0 %1361
        %1363 = vrot.lane.b32.xlu0 %v1299, 32
        %v1364 = vpop.permute.xlu0 %1363
        %1365 = vrot.lane.b32.xlu0 %v1301, 32
        %v1366 = vpop.permute.xlu0 %1365
        %1367 = vrot.lane.b32.xlu0 %v1304, 32
        %v1368 = vpop.permute.xlu0 %1367
        %1369 = vrot.lane.b32.xlu0 %v1306, 32
        %v1370 = vpop.permute.xlu0 %1369
        %1371 = vrot.lane.b32.xlu0 %v1308, 32
        %v1372 = vpop.permute.xlu0 %1371
        %1373 = vrot.lane.b32.xlu0 %v1310, 32
        %v1374 = vpop.permute.xlu0 %1373
        %vm1407 = vcmask 130048
        %v1408 = vsel %vm1407, %v1053, %v1143
        %v1409 = vsel %vm1407, %v967, %v1145
        %v1410 = vsel %vm1407, %v969, %v1147
        %v1411 = vsel %vm1407, %v971, %v1149
        %v1412 = vsel %vm1407, %v1054, %v1151
        %v1413 = vsel %vm1407, %v974, %v1153
        %v1414 = vsel %vm1407, %v976, %v1155
        %v1415 = vsel %vm1407, %v978, %v1157
        %v1416 = vsel %vm1407, %v1055, %v1159
        %v1417 = vsel %vm1407, %v981, %v1161
        %v1418 = vsel %vm1407, %v983, %v1163
        %v1419 = vsel %vm1407, %v985, %v1165
        %v1420 = vsel %vm1407, %v1056, %v1167
        %v1421 = vsel %vm1407, %v988, %v1169
        %v1422 = vsel %vm1407, %v990, %v1171
        %v1423 = vsel %vm1407, %v992, %v1173
        %v1424 = vsel %vm1407, %v1057, %v1175
        %v1425 = vsel %vm1407, %v995, %v1177
        %v1426 = vsel %vm1407, %v997, %v1179
        %v1427 = vsel %vm1407, %v999, %v1181
        %v1428 = vsel %vm1407, %v1058, %v1183
        %v1429 = vsel %vm1407, %v1002, %v1185
        %v1430 = vsel %vm1407, %v1004, %v1187
        %v1431 = vsel %vm1407, %v1006, %v1189
        %v1432 = vsel %vm1407, %v1059, %v1191
        %v1433 = vsel %vm1407, %v1009, %v1193
        %v1434 = vsel %vm1407, %v1011, %v1195
        %v1435 = vsel %vm1407, %v1013, %v1197
        %v1436 = vsel %vm1407, %v1060, %v1199
        %v1437 = vsel %vm1407, %v1016, %v1201
        %v1438 = vsel %vm1407, %v1018, %v1203
        %v1439 = vsel %vm1407, %v1020, %v1205
        %v1440 = vsel %vm610, %v1408, %v1312
        %v1441 = vsel %vm610, %v1409, %v1314
        %v1442 = vsel %vm610, %v1410, %v1316
        %v1443 = vsel %vm610, %v1411, %v1318
        %v1444 = vsel %vm610, %v1412, %v1320
        %v1445 = vsel %vm610, %v1413, %v1322
        %v1446 = vsel %vm610, %v1414, %v1324
        %v1447 = vsel %vm610, %v1415, %v1326
        %v1448 = vsel %vm610, %v1416, %v1328
        %v1449 = vsel %vm610, %v1417, %v1330
        %v1450 = vsel %vm610, %v1418, %v1332
        %v1451 = vsel %vm610, %v1419, %v1334
        %v1452 = vsel %vm610, %v1420, %v1336
        %v1453 = vsel %vm610, %v1421, %v1338
        %v1454 = vsel %vm610, %v1422, %v1340
        %v1455 = vsel %vm610, %v1423, %v1342
        %v1456 = vsel %vm610, %v1424, %v1344
        %v1457 = vsel %vm610, %v1425, %v1346
        %v1458 = vsel %vm610, %v1426, %v1348
        %v1459 = vsel %vm610, %v1427, %v1350
        %v1460 = vsel %vm610, %v1428, %v1352
        %v1461 = vsel %vm610, %v1429, %v1354
        %v1462 = vsel %vm610, %v1430, %v1356
        %v1463 = vsel %vm610, %v1431, %v1358
        %v1464 = vsel %vm610, %v1432, %v1360
        %v1465 = vsel %vm610, %v1433, %v1362
        %v1466 = vsel %vm610, %v1434, %v1364
        %v1467 = vsel %vm610, %v1435, %v1366
        %v1468 = vsel %vm610, %v1436, %v1368
        %v1469 = vsel %vm610, %v1437, %v1370
        %v1470 = vsel %vm610, %v1438, %v1372
        %v1471 = vsel %vm610, %v1439, %v1374
        %v1472 = vld [vmem:[%s2] sm:$0xff]
        %v1473 = vld [vmem:[%s2 + $0x8] sm:$0xff]
        %v1474 = vld [vmem:[%s2 + $0x10] sm:$0xff]
        %v1475 = vld [vmem:[%s2 + $0x18] sm:$0xff]
        %v1476 = vld [vmem:[%s2 + $0x20] sm:$0xff]
        %v1477 = vld [vmem:[%s2 + $0x28] sm:$0xff]
        %v1478 = vld [vmem:[%s3] sm:$0x1]
        %v1480 = vlaneseq
        %v1481 = vshrl.u32 %v1480, 7
        %v1482 = vsub.s32 0, %v1481
        %v1483 = vrot.slane %v1478, %v1482
        %vm1485 = vcmask 392192
        %v1487 = vsel %vm1485, %v1440, 0
        %v1490 = vsel %vm1485, %v1441, 0
        %v1493 = vsel %vm1485, %v1442, 0
        %v1496 = vsel %vm1485, %v1443, 0
        %v1499 = vsel %vm1485, %v1444, 0
        %v1502 = vsel %vm1485, %v1445, 0
        %v1505 = vsel %vm1485, %v1446, 0
        %v1508 = vsel %vm1485, %v1447, 0
        %v1511 = vsel %vm1485, %v1448, 0
        %v1514 = vsel %vm1485, %v1449, 0
        %v1517 = vsel %vm1485, %v1450, 0
        %v1520 = vsel %vm1485, %v1451, 0
        %v1523 = vsel %vm1485, %v1452, 0
        %v1526 = vsel %vm1485, %v1453, 0
        %v1529 = vsel %vm1485, %v1454, 0
        %v1532 = vsel %vm1485, %v1455, 0
        %v1535 = vsel %vm1485, %v1456, 0
        %v1538 = vsel %vm1485, %v1457, 0
        %v1541 = vsel %vm1485, %v1458, 0
        %v1544 = vsel %vm1485, %v1459, 0
        %v1547 = vsel %vm1485, %v1460, 0
        %v1550 = vsel %vm1485, %v1461, 0
        %v1553 = vsel %vm1485, %v1462, 0
        %v1556 = vsel %vm1485, %v1463, 0
        %v1559 = vsel %vm1485, %v1464, 0
        %v1562 = vsel %vm1485, %v1465, 0
        %v1565 = vsel %vm1485, %v1466, 0
        %v1568 = vsel %vm1485, %v1467, 0
        %v1571 = vsel %vm1485, %v1468, 0
        %v1574 = vsel %vm1485, %v1469, 0
        %v1577 = vsel %vm1485, %v1470, 0
        %v1580 = vsel %vm1485, %v1471, 0
        %1582 = vmatprep.subr.mxu0 0.0
        %1583 = vmatpush1.msra.mxu0 %v1472
        %1584 = vmatprep.subr.mxu0 0.0
        %1585 = vmatpush1.msra.mxu0 %v1473
        %1586 = vmatprep.subr.mxu0 0.0
        %1587 = vmatpush1.msra.mxu0 %v1474
        %1588 = vmatprep.subr.mxu0 0.0
        %1589 = vmatpush1.msra.mxu0 %v1475
        %1590 = vmatprep.subr.mxu0 0.0
        %1591 = vmatpush1.msra.mxu0 %v1476
        %1592 = vmatprep.subr.mxu0 0.0
        %1593 = vmatpush1.msra.mxu0 %v1477
        %1594 = vmatprep.subr.mxu0 0.0
        %1595 = vmatpush1.msra.mxu0 0.0
        %1596 = vmatprep.subr.mxu0 0.0
        %1597 = vmatpush1.msra.mxu0 0.0
        %1598 = vmatprep.subr.mxu0 0.0
        %1599 = vmatpush1.msra.mxu0 0.0
        %1600 = vmatprep.subr.mxu0 0.0
        %1601 = vmatpush1.msra.mxu0 0.0
        %1602 = vmatprep.subr.mxu0 0.0
        %1603 = vmatpush1.msra.mxu0 0.0
        %1604 = vmatprep.subr.mxu0 0.0
        %1605 = vmatpush1.msra.mxu0 0.0
        %1606 = vmatprep.subr.mxu0 0.0
        %1607 = vmatpush1.msra.mxu0 0.0
        %1608 = vmatprep.subr.mxu0 0.0
        %1609 = vmatpush1.msra.mxu0 0.0
        %1610 = vmatprep.subr.mxu0 0.0
        %1611 = vmatpush1.msra.mxu0 0.0
        %1612 = vmatprep.subr.mxu0 0.0
        %1613 = vmatpush1.msra.mxu0 0.0
        %1614 = vmatprep.subr.mxu0 0.0
        %1615 = vmatpush1.msra.mxu0 0.0
        %1616 = vmatprep.subr.mxu0 0.0
        %1617 = vmatpush1.msra.mxu0 0.0
        %1618 = vmatprep.subr.mxu0 0.0
        %1619 = vmatpush1.msra.mxu0 0.0
        %1620 = vmatprep.subr.mxu0 0.0
        %1621 = vmatpush1.msra.mxu0 0.0
        %1622 = vmatprep.subr.mxu0 0.0
        %1623 = vmatpush1.msra.mxu0 0.0
        %1624 = vmatprep.subr.mxu0 0.0
        %1625 = vmatpush1.msra.mxu0 0.0
        %1626 = vmatprep.subr.mxu0 0.0
        %1627 = vmatpush1.msra.mxu0 0.0
        %1628 = vmatprep.subr.mxu0 0.0
        %1629 = vmatpush1.msra.mxu0 0.0
        %1630 = vmatprep.subr.mxu0 0.0
        %1631 = vmatpush1.msra.mxu0 0.0
        %1632 = vmatprep.subr.mxu0 0.0
        %1633 = vmatpush1.msra.mxu0 0.0
        %1634 = vmatprep.subr.mxu0 0.0
        %1635 = vmatpush1.msra.mxu0 0.0
        %1636 = vmatprep.subr.mxu0 0.0
        %1637 = vmatpush1.msra.mxu0 0.0
        %1638 = vmatprep.subr.mxu0 0.0
        %1639 = vmatpush1.msra.mxu0 0.0
        %1640 = vmatprep.subr.mxu0 0.0
        %1641 = vmatpush1.msra.mxu0 0.0
        %1642 = vmatprep.subr.mxu0 0.0
        %1643 = vmatpush1.msra.mxu0 0.0
        %1644 = vmatprep.subr.mxu0 0.0
        %1645 = vmatpush1.msra.mxu0 0.0
        %1646 = vmatprep.mubr.f32.mxu0 0.0
        %1647 = vmatmul.mubr.f32.gmra.mrb[0].mxu0 %v1487
        %v1648 = vpop.f32.mrb[0].mxu0
        %v1649 = vadd.f32 %v1483, %v1648
        %v1650 = vpop.f32.mrb[0].mxu0
        %1651 = vmatprep.mubr.f32.mxu0 0.0
        %1652 = vmatmul.mubr.f32.gmra.mrb[0].mxu0 %v1490
        %v1653 = vpop.f32.mrb[0].mxu0
        %v1654 = vadd.f32 %v1483, %v1653
        %v1655 = vpop.f32.mrb[0].mxu0
        %1656 = vmatprep.mubr.f32.mxu0 0.0
        %1657 = vmatmul.mubr.f32.gmra.mrb[0].mxu0 %v1493
        %v1658 = vpop.f32.mrb[0].mxu0
        %v1659 = vadd.f32 %v1483, %v1658
        %v1660 = vpop.f32.mrb[0].mxu0
        %1661 = vmatprep.mubr.f32.mxu0 0.0
        %1662 = vmatmul.mubr.f32.gmra.mrb[0].mxu0 %v1496
        %v1663 = vpop.f32.mrb[0].mxu0
        %v1664 = vadd.f32 %v1483, %v1663
        %v1665 = vpop.f32.mrb[0].mxu0
        %1666 = vmatprep.mubr.f32.mxu0 0.0
        %1667 = vmatmul.mubr.f32.gmra.mrb[0].mxu0 %v1499
        %v1668 = vpop.f32.mrb[0].mxu0
        %v1669 = vadd.f32 %v1483, %v1668
        %v1670 = vpop.f32.mrb[0].mxu0
        %1671 = vmatprep.mubr.f32.mxu0 0.0
        %1672 = vmatmul.mubr.f32.gmra.mrb[0].mxu0 %v1502
        %v1673 = vpop.f32.mrb[0].mxu0
        %v1674 = vadd.f32 %v1483, %v1673
        %v1675 = vpop.f32.mrb[0].mxu0
        %1676 = vmatprep.mubr.f32.mxu0 0.0
        %1677 = vmatmul.mubr.f32.gmra.mrb[0].mxu0 %v1505
        %v1678 = vpop.f32.mrb[0].mxu0
        %v1679 = vadd.f32 %v1483, %v1678
        %v1680 = vpop.f32.mrb[0].mxu0
        %1681 = vmatprep.mubr.f32.mxu0 0.0
        %1682 = vmatmul.mubr.f32.gmra.mrb[0].mxu0 %v1508
        %v1683 = vpop.f32.mrb[0].mxu0
        %v1684 = vadd.f32 %v1483, %v1683
        %v1685 = vpop.f32.mrb[0].mxu0
        %1686 = vmatprep.mubr.f32.mxu0 0.0
        %1687 = vmatmul.mubr.f32.gmra.mrb[0].mxu0 %v1511
        %v1688 = vpop.f32.mrb[0].mxu0
        %v1689 = vadd.f32 %v1483, %v1688
        %v1690 = vpop.f32.mrb[0].mxu0
        %1691 = vmatprep.mubr.f32.mxu0 0.0
        %1692 = vmatmul.mubr.f32.gmra.mrb[0].mxu0 %v1514
        %v1693 = vpop.f32.mrb[0].mxu0
        %v1694 = vadd.f32 %v1483, %v1693
        %v1695 = vpop.f32.mrb[0].mxu0
        %1696 = vmatprep.mubr.f32.mxu0 0.0
        %1697 = vmatmul.mubr.f32.gmra.mrb[0].mxu0 %v1517
        %v1698 = vpop.f32.mrb[0].mxu0
        %v1699 = vadd.f32 %v1483, %v1698
        %v1700 = vpop.f32.mrb[0].mxu0
        %1701 = vmatprep.mubr.f32.mxu0 0.0
        %1702 = vmatmul.mubr.f32.gmra.mrb[0].mxu0 %v1520
        %v1703 = vpop.f32.mrb[0].mxu0
        %v1704 = vadd.f32 %v1483, %v1703
        %v1705 = vpop.f32.mrb[0].mxu0
        %1706 = vmatprep.mubr.f32.mxu0 0.0
        %1707 = vmatmul.mubr.f32.gmra.mrb[0].mxu0 %v1523
        %v1708 = vpop.f32.mrb[0].mxu0
        %v1709 = vadd.f32 %v1483, %v1708
        %v1710 = vpop.f32.mrb[0].mxu0
        %1711 = vmatprep.mubr.f32.mxu0 0.0
        %1712 = vmatmul.mubr.f32.gmra.mrb[0].mxu0 %v1526
        %v1713 = vpop.f32.mrb[0].mxu0
        %v1714 = vadd.f32 %v1483, %v1713
        %v1715 = vpop.f32.mrb[0].mxu0
        %1716 = vmatprep.mubr.f32.mxu0 0.0
        %1717 = vmatmul.mubr.f32.gmra.mrb[0].mxu0 %v1529
        %v1718 = vpop.f32.mrb[0].mxu0
        %v1719 = vadd.f32 %v1483, %v1718
        %v1720 = vpop.f32.mrb[0].mxu0
        %1721 = vmatprep.mubr.f32.mxu0 0.0
        %1722 = vmatmul.mubr.f32.gmra.mrb[0].mxu0 %v1532
        %v1723 = vpop.f32.mrb[0].mxu0
        %v1724 = vadd.f32 %v1483, %v1723
        %v1725 = vpop.f32.mrb[0].mxu0
        %1726 = vmatprep.mubr.f32.mxu0 0.0
        %1727 = vmatmul.mubr.f32.gmra.mrb[0].mxu0 %v1535
        %v1728 = vpop.f32.mrb[0].mxu0
        %v1729 = vadd.f32 %v1483, %v1728
        %v1730 = vpop.f32.mrb[0].mxu0
        %1731 = vmatprep.mubr.f32.mxu0 0.0
        %1732 = vmatmul.mubr.f32.gmra.mrb[0].mxu0 %v1538
        %v1733 = vpop.f32.mrb[0].mxu0
        %v1734 = vadd.f32 %v1483, %v1733
        %v1735 = vpop.f32.mrb[0].mxu0
        %1736 = vmatprep.mubr.f32.mxu0 0.0
        %1737 = vmatmul.mubr.f32.gmra.mrb[0].mxu0 %v1541
        %v1738 = vpop.f32.mrb[0].mxu0
        %v1739 = vadd.f32 %v1483, %v1738
        %v1740 = vpop.f32.mrb[0].mxu0
        %1741 = vmatprep.mubr.f32.mxu0 0.0
        %1742 = vmatmul.mubr.f32.gmra.mrb[0].mxu0 %v1544
        %v1743 = vpop.f32.mrb[0].mxu0
        %v1744 = vadd.f32 %v1483, %v1743
        %v1745 = vpop.f32.mrb[0].mxu0
        %1746 = vmatprep.mubr.f32.mxu0 0.0
        %1747 = vmatmul.mubr.f32.gmra.mrb[0].mxu0 %v1547
        %v1748 = vpop.f32.mrb[0].mxu0
        %v1749 = vadd.f32 %v1483, %v1748
        %v1750 = vpop.f32.mrb[0].mxu0
        %1751 = vmatprep.mubr.f32.mxu0 0.0
        %1752 = vmatmul.mubr.f32.gmra.mrb[0].mxu0 %v1550
        %v1753 = vpop.f32.mrb[0].mxu0
        %v1754 = vadd.f32 %v1483, %v1753
        %v1755 = vpop.f32.mrb[0].mxu0
        %1756 = vmatprep.mubr.f32.mxu0 0.0
        %1757 = vmatmul.mubr.f32.gmra.mrb[0].mxu0 %v1553
        %v1758 = vpop.f32.mrb[0].mxu0
        %v1759 = vadd.f32 %v1483, %v1758
        %v1760 = vpop.f32.mrb[0].mxu0
        %1761 = vmatprep.mubr.f32.mxu0 0.0
        %1762 = vmatmul.mubr.f32.gmra.mrb[0].mxu0 %v1556
        %v1763 = vpop.f32.mrb[0].mxu0
        %v1764 = vadd.f32 %v1483, %v1763
        %v1765 = vpop.f32.mrb[0].mxu0
        %1766 = vmatprep.mubr.f32.mxu0 0.0
        %1767 = vmatmul.mubr.f32.gmra.mrb[0].mxu0 %v1559
        %v1768 = vpop.f32.mrb[0].mxu0
        %v1769 = vadd.f32 %v1483, %v1768
        %v1770 = vpop.f32.mrb[0].mxu0
        %1771 = vmatprep.mubr.f32.mxu0 0.0
        %1772 = vmatmul.mubr.f32.gmra.mrb[0].mxu0 %v1562
        %v1773 = vpop.f32.mrb[0].mxu0
        %v1774 = vadd.f32 %v1483, %v1773
        %v1775 = vpop.f32.mrb[0].mxu0
        %1776 = vmatprep.mubr.f32.mxu0 0.0
        %1777 = vmatmul.mubr.f32.gmra.mrb[0].mxu0 %v1565
        %v1778 = vpop.f32.mrb[0].mxu0
        %v1779 = vadd.f32 %v1483, %v1778
        %v1780 = vpop.f32.mrb[0].mxu0
        %1781 = vmatprep.mubr.f32.mxu0 0.0
        %1782 = vmatmul.mubr.f32.gmra.mrb[0].mxu0 %v1568
        %v1783 = vpop.f32.mrb[0].mxu0
        %v1784 = vadd.f32 %v1483, %v1783
        %v1785 = vpop.f32.mrb[0].mxu0
        %1786 = vmatprep.mubr.f32.mxu0 0.0
        %1787 = vmatmul.mubr.f32.gmra.mrb[0].mxu0 %v1571
        %v1788 = vpop.f32.mrb[0].mxu0
        %v1789 = vadd.f32 %v1483, %v1788
        %v1790 = vpop.f32.mrb[0].mxu0
        %1791 = vmatprep.mubr.f32.mxu0 0.0
        %1792 = vmatmul.mubr.f32.gmra.mrb[0].mxu0 %v1574
        %v1793 = vpop.f32.mrb[0].mxu0
        %v1794 = vadd.f32 %v1483, %v1793
        %v1795 = vpop.f32.mrb[0].mxu0
        %1796 = vmatprep.mubr.f32.mxu0 0.0
        %1797 = vmatmul.mubr.f32.gmra.mrb[0].mxu0 %v1577
        %v1798 = vpop.f32.mrb[0].mxu0
        %v1799 = vadd.f32 %v1483, %v1798
        %v1800 = vpop.f32.mrb[0].mxu0
        %1801 = vmatprep.mubr.f32.mxu0 0.0
        %1802 = vmatmul.mubr.f32.gmra.mrb[0].mxu0 %v1580
        %v1803 = vpop.f32.mrb[0].mxu0
        %v1804 = vadd.f32 %v1483, %v1803
        %v1805 = vpop.f32.mrb[0].mxu0
        %1806 = vdwg.mxu0
        %v1807 = vmax.f32 %v1649, 0.0
        %v1808 = vmax.f32 %v1654, 0.0
        %v1809 = vmax.f32 %v1659, 0.0
        %v1810 = vmax.f32 %v1664, 0.0
        %v1811 = vmax.f32 %v1669, 0.0
        %v1812 = vmax.f32 %v1674, 0.0
        %v1813 = vmax.f32 %v1679, 0.0
        %v1814 = vmax.f32 %v1684, 0.0
        %v1815 = vmax.f32 %v1689, 0.0
        %v1816 = vmax.f32 %v1694, 0.0
        %v1817 = vmax.f32 %v1699, 0.0
        %v1818 = vmax.f32 %v1704, 0.0
        %v1819 = vmax.f32 %v1709, 0.0
        %v1820 = vmax.f32 %v1714, 0.0
        %v1821 = vmax.f32 %v1719, 0.0
        %v1822 = vmax.f32 %v1724, 0.0
        %v1823 = vmax.f32 %v1729, 0.0
        %v1824 = vmax.f32 %v1734, 0.0
        %v1825 = vmax.f32 %v1739, 0.0
        %v1826 = vmax.f32 %v1744, 0.0
        %v1827 = vmax.f32 %v1749, 0.0
        %v1828 = vmax.f32 %v1754, 0.0
        %v1829 = vmax.f32 %v1759, 0.0
        %v1830 = vmax.f32 %v1764, 0.0
        %v1831 = vmax.f32 %v1769, 0.0
        %v1832 = vmax.f32 %v1774, 0.0
        %v1833 = vmax.f32 %v1779, 0.0
        %v1834 = vmax.f32 %v1784, 0.0
        %v1835 = vmax.f32 %v1789, 0.0
        %v1836 = vmax.f32 %v1794, 0.0
        %v1837 = vmax.f32 %v1799, 0.0
        %v1838 = vmax.f32 %v1804, 0.0
        %v1871 = vrot.slane %v1807, 6
        %v1872 = vrot.slane %v1808, 6
        %v1873 = vsel %vm964, %v1871, %v1872
        %v1874 = vrot.slane %v1809, 6
        %v1875 = vsel %vm964, %v1872, %v1874
        %v1876 = vrot.slane %v1810, 6
        %v1877 = vsel %vm964, %v1874, %v1876
        %v1878 = vrot.slane %v1811, 6
        %v1879 = vrot.slane %v1812, 6
        %v1880 = vsel %vm964, %v1878, %v1879
        %v1881 = vrot.slane %v1813, 6
        %v1882 = vsel %vm964, %v1879, %v1881
        %v1883 = vrot.slane %v1814, 6
        %v1884 = vsel %vm964, %v1881, %v1883
        %v1885 = vrot.slane %v1815, 6
        %v1886 = vrot.slane %v1816, 6
        %v1887 = vsel %vm964, %v1885, %v1886
        %v1888 = vrot.slane %v1817, 6
        %v1889 = vsel %vm964, %v1886, %v1888
        %v1890 = vrot.slane %v1818, 6
        %v1891 = vsel %vm964, %v1888, %v1890
        %v1892 = vrot.slane %v1819, 6
        %v1893 = vrot.slane %v1820, 6
        %v1894 = vsel %vm964, %v1892, %v1893
        %v1895 = vrot.slane %v1821, 6
        %v1896 = vsel %vm964, %v1893, %v1895
        %v1897 = vrot.slane %v1822, 6
        %v1898 = vsel %vm964, %v1895, %v1897
        %v1899 = vrot.slane %v1823, 6
        %v1900 = vrot.slane %v1824, 6
        %v1901 = vsel %vm964, %v1899, %v1900
        %v1902 = vrot.slane %v1825, 6
        %v1903 = vsel %vm964, %v1900, %v1902
        %v1904 = vrot.slane %v1826, 6
        %v1905 = vsel %vm964, %v1902, %v1904
        %v1906 = vrot.slane %v1827, 6
        %v1907 = vrot.slane %v1828, 6
        %v1908 = vsel %vm964, %v1906, %v1907
        %v1909 = vrot.slane %v1829, 6
        %v1910 = vsel %vm964, %v1907, %v1909
        %v1911 = vrot.slane %v1830, 6
        %v1912 = vsel %vm964, %v1909, %v1911
        %v1913 = vrot.slane %v1831, 6
        %v1914 = vrot.slane %v1832, 6
        %v1915 = vsel %vm964, %v1913, %v1914
        %v1916 = vrot.slane %v1833, 6
        %v1917 = vsel %vm964, %v1914, %v1916
        %v1918 = vrot.slane %v1834, 6
        %v1919 = vsel %vm964, %v1916, %v1918
        %v1920 = vrot.slane %v1835, 6
        %v1921 = vrot.slane %v1836, 6
        %v1922 = vsel %vm964, %v1920, %v1921
        %v1923 = vrot.slane %v1837, 6
        %v1924 = vsel %vm964, %v1921, %v1923
        %v1925 = vrot.slane %v1838, 6
        %v1926 = vsel %vm964, %v1923, %v1925
        %v1959 = vsel %vm964, 0.0, %v1871
        %v1960 = vsel %vm964, 0.0, %v1878
        %v1961 = vsel %vm964, 0.0, %v1885
        %v1962 = vsel %vm964, 0.0, %v1892
        %v1963 = vsel %vm964, 0.0, %v1899
        %v1964 = vsel %vm964, 0.0, %v1906
        %v1965 = vsel %vm964, 0.0, %v1913
        %v1966 = vsel %vm964, 0.0, %v1920
        %v1975 = vrot.slane %v1959, 1
        %v1976 = vrot.slane %v1873, 1
        %v1977 = vsel %vm1069, %v1975, %v1976
        %v1978 = vrot.slane %v1875, 1
        %v1979 = vsel %vm1069, %v1976, %v1978
        %v1980 = vrot.slane %v1877, 1
        %v1981 = vsel %vm1069, %v1978, %v1980
        %v1982 = vrot.slane %v1876, 1
        %v1983 = vsel %vm1069, %v1980, %v1982
        %v1984 = vrot.slane %v1960, 1
        %v1985 = vrot.slane %v1880, 1
        %v1986 = vsel %vm1069, %v1984, %v1985
        %v1987 = vrot.slane %v1882, 1
        %v1988 = vsel %vm1069, %v1985, %v1987
        %v1989 = vrot.slane %v1884, 1
        %v1990 = vsel %vm1069, %v1987, %v1989
        %v1991 = vrot.slane %v1883, 1
        %v1992 = vsel %vm1069, %v1989, %v1991
        %v1993 = vrot.slane %v1961, 1
        %v1994 = vrot.slane %v1887, 1
        %v1995 = vsel %vm1069, %v1993, %v1994
        %v1996 = vrot.slane %v1889, 1
        %v1997 = vsel %vm1069, %v1994, %v1996
        %v1998 = vrot.slane %v1891, 1
        %v1999 = vsel %vm1069, %v1996, %v1998
        %v2000 = vrot.slane %v1890, 1
        %v2001 = vsel %vm1069, %v1998, %v2000
        %v2002 = vrot.slane %v1962, 1
        %v2003 = vrot.slane %v1894, 1
        %v2004 = vsel %vm1069, %v2002, %v2003
        %v2005 = vrot.slane %v1896, 1
        %v2006 = vsel %vm1069, %v2003, %v2005
        %v2007 = vrot.slane %v1898, 1
        %v2008 = vsel %vm1069, %v2005, %v2007
        %v2009 = vrot.slane %v1897, 1
        %v2010 = vsel %vm1069, %v2007, %v2009
        %v2011 = vrot.slane %v1963, 1
        %v2012 = vrot.slane %v1901, 1
        %v2013 = vsel %vm1069, %v2011, %v2012
        %v2014 = vrot.slane %v1903, 1
        %v2015 = vsel %vm1069, %v2012, %v2014
        %v2016 = vrot.slane %v1905, 1
        %v2017 = vsel %vm1069, %v2014, %v2016
        %v2018 = vrot.slane %v1904, 1
        %v2019 = vsel %vm1069, %v2016, %v2018
        %v2020 = vrot.slane %v1964, 1
        %v2021 = vrot.slane %v1908, 1
        %v2022 = vsel %vm1069, %v2020, %v2021
        %v2023 = vrot.slane %v1910, 1
        %v2024 = vsel %vm1069, %v2021, %v2023
        %v2025 = vrot.slane %v1912, 1
        %v2026 = vsel %vm1069, %v2023, %v2025
        %v2027 = vrot.slane %v1911, 1
        %v2028 = vsel %vm1069, %v2025, %v2027
        %v2029 = vrot.slane %v1965, 1
        %v2030 = vrot.slane %v1915, 1
        %v2031 = vsel %vm1069, %v2029, %v2030
        %v2032 = vrot.slane %v1917, 1
        %v2033 = vsel %vm1069, %v2030, %v2032
        %v2034 = vrot.slane %v1919, 1
        %v2035 = vsel %vm1069, %v2032, %v2034
        %v2036 = vrot.slane %v1918, 1
        %v2037 = vsel %vm1069, %v2034, %v2036
        %v2038 = vrot.slane %v1966, 1
        %v2039 = vrot.slane %v1922, 1
        %v2040 = vsel %vm1069, %v2038, %v2039
        %v2041 = vrot.slane %v1924, 1
        %v2042 = vsel %vm1069, %v2039, %v2041
        %v2043 = vrot.slane %v1926, 1
        %v2044 = vsel %vm1069, %v2041, %v2043
        %v2045 = vrot.slane %v1925, 1
        %v2046 = vsel %vm1069, %v2043, %v2045
        %2047 = vrot.lane.b32.xlu0 %v1977, 32
        %v2048 = vpop.permute.xlu0 %2047
        %2049 = vrot.lane.b32.xlu0 %v1979, 32
        %v2050 = vpop.permute.xlu0 %2049
        %2051 = vrot.lane.b32.xlu0 %v1981, 32
        %v2052 = vpop.permute.xlu0 %2051
        %2053 = vrot.lane.b32.xlu0 %v1983, 32
        %v2054 = vpop.permute.xlu0 %2053
        %2055 = vrot.lane.b32.xlu0 %v1986, 32
        %v2056 = vpop.permute.xlu0 %2055
        %2057 = vrot.lane.b32.xlu0 %v1988, 32
        %v2058 = vpop.permute.xlu0 %2057
        %2059 = vrot.lane.b32.xlu0 %v1990, 32
        %v2060 = vpop.permute.xlu0 %2059
        %2061 = vrot.lane.b32.xlu0 %v1992, 32
        %v2062 = vpop.permute.xlu0 %2061
        %2063 = vrot.lane.b32.xlu0 %v1995, 32
        %v2064 = vpop.permute.xlu0 %2063
        %2065 = vrot.lane.b32.xlu0 %v1997, 32
        %v2066 = vpop.permute.xlu0 %2065
        %2067 = vrot.lane.b32.xlu0 %v1999, 32
        %v2068 = vpop.permute.xlu0 %2067
        %2069 = vrot.lane.b32.xlu0 %v2001, 32
        %v2070 = vpop.permute.xlu0 %2069
        %2071 = vrot.lane.b32.xlu0 %v2004, 32
        %v2072 = vpop.permute.xlu0 %2071
        %2073 = vrot.lane.b32.xlu0 %v2006, 32
        %v2074 = vpop.permute.xlu0 %2073
        %2075 = vrot.lane.b32.xlu0 %v2008, 32
        %v2076 = vpop.permute.xlu0 %2075
        %2077 = vrot.lane.b32.xlu0 %v2010, 32
        %v2078 = vpop.permute.xlu0 %2077
        %2079 = vrot.lane.b32.xlu0 %v2013, 32
        %v2080 = vpop.permute.xlu0 %2079
        %2081 = vrot.lane.b32.xlu0 %v2015, 32
        %v2082 = vpop.permute.xlu0 %2081
        %2083 = vrot.lane.b32.xlu0 %v2017, 32
        %v2084 = vpop.permute.xlu0 %2083
        %2085 = vrot.lane.b32.xlu0 %v2019, 32
        %v2086 = vpop.permute.xlu0 %2085
        %2087 = vrot.lane.b32.xlu0 %v2022, 32
        %v2088 = vpop.permute.xlu0 %2087
        %2089 = vrot.lane.b32.xlu0 %v2024, 32
        %v2090 = vpop.permute.xlu0 %2089
        %2091 = vrot.lane.b32.xlu0 %v2026, 32
        %v2092 = vpop.permute.xlu0 %2091
        %2093 = vrot.lane.b32.xlu0 %v2028, 32
        %v2094 = vpop.permute.xlu0 %2093
        %2095 = vrot.lane.b32.xlu0 %v2031, 32
        %v2096 = vpop.permute.xlu0 %2095
        %2097 = vrot.lane.b32.xlu0 %v2033, 32
        %v2098 = vpop.permute.xlu0 %2097
        %2099 = vrot.lane.b32.xlu0 %v2035, 32
        %v2100 = vpop.permute.xlu0 %2099
        %2101 = vrot.lane.b32.xlu0 %v2037, 32
        %v2102 = vpop.permute.xlu0 %2101
        %2103 = vrot.lane.b32.xlu0 %v2040, 32
        %v2104 = vpop.permute.xlu0 %2103
        %2105 = vrot.lane.b32.xlu0 %v2042, 32
        %v2106 = vpop.permute.xlu0 %2105
        %2107 = vrot.lane.b32.xlu0 %v2044, 32
        %v2108 = vpop.permute.xlu0 %2107
        %2109 = vrot.lane.b32.xlu0 %v2046, 32
        %v2110 = vpop.permute.xlu0 %2109
        %v2143 = vrot.slane %v1959, 2
        %v2144 = vrot.slane %v1873, 2
        %v2145 = vsel %vm1238, %v2143, %v2144
        %v2146 = vrot.slane %v1875, 2
        %v2147 = vsel %vm1238, %v2144, %v2146
        %v2148 = vrot.slane %v1877, 2
        %v2149 = vsel %vm1238, %v2146, %v2148
        %v2150 = vrot.slane %v1876, 2
        %v2151 = vsel %vm1238, %v2148, %v2150
        %v2152 = vrot.slane %v1960, 2
        %v2153 = vrot.slane %v1880, 2
        %v2154 = vsel %vm1238, %v2152, %v2153
        %v2155 = vrot.slane %v1882, 2
        %v2156 = vsel %vm1238, %v2153, %v2155
        %v2157 = vrot.slane %v1884, 2
        %v2158 = vsel %vm1238, %v2155, %v2157
        %v2159 = vrot.slane %v1883, 2
        %v2160 = vsel %vm1238, %v2157, %v2159
        %v2161 = vrot.slane %v1961, 2
        %v2162 = vrot.slane %v1887, 2
        %v2163 = vsel %vm1238, %v2161, %v2162
        %v2164 = vrot.slane %v1889, 2
        %v2165 = vsel %vm1238, %v2162, %v2164
        %v2166 = vrot.slane %v1891, 2
        %v2167 = vsel %vm1238, %v2164, %v2166
        %v2168 = vrot.slane %v1890, 2
        %v2169 = vsel %vm1238, %v2166, %v2168
        %v2170 = vrot.slane %v1962, 2
        %v2171 = vrot.slane %v1894, 2
        %v2172 = vsel %vm1238, %v2170, %v2171
        %v2173 = vrot.slane %v1896, 2
        %v2174 = vsel %vm1238, %v2171, %v2173
        %v2175 = vrot.slane %v1898, 2
        %v2176 = vsel %vm1238, %v2173, %v2175
        %v2177 = vrot.slane %v1897, 2
        %v2178 = vsel %vm1238, %v2175, %v2177
        %v2179 = vrot.slane %v1963, 2
        %v2180 = vrot.slane %v1901, 2
        %v2181 = vsel %vm1238, %v2179, %v2180
        %v2182 = vrot.slane %v1903, 2
        %v2183 = vsel %vm1238, %v2180, %v2182
        %v2184 = vrot.slane %v1905, 2
        %v2185 = vsel %vm1238, %v2182, %v2184
        %v2186 = vrot.slane %v1904, 2
        %v2187 = vsel %vm1238, %v2184, %v2186
        %v2188 = vrot.slane %v1964, 2
        %v2189 = vrot.slane %v1908, 2
        %v2190 = vsel %vm1238, %v2188, %v2189
        %v2191 = vrot.slane %v1910, 2
        %v2192 = vsel %vm1238, %v2189, %v2191
        %v2193 = vrot.slane %v1912, 2
        %v2194 = vsel %vm1238, %v2191, %v2193
        %v2195 = vrot.slane %v1911, 2
        %v2196 = vsel %vm1238, %v2193, %v2195
        %v2197 = vrot.slane %v1965, 2
        %v2198 = vrot.slane %v1915, 2
        %v2199 = vsel %vm1238, %v2197, %v2198
        %v2200 = vrot.slane %v1917, 2
        %v2201 = vsel %vm1238, %v2198, %v2200
        %v2202 = vrot.slane %v1919, 2
        %v2203 = vsel %vm1238, %v2200, %v2202
        %v2204 = vrot.slane %v1918, 2
        %v2205 = vsel %vm1238, %v2202, %v2204
        %v2206 = vrot.slane %v1966, 2
        %v2207 = vrot.slane %v1922, 2
        %v2208 = vsel %vm1238, %v2206, %v2207
        %v2209 = vrot.slane %v1924, 2
        %v2210 = vsel %vm1238, %v2207, %v2209
        %v2211 = vrot.slane %v1926, 2
        %v2212 = vsel %vm1238, %v2209, %v2211
        %v2213 = vrot.slane %v1925, 2
        %v2214 = vsel %vm1238, %v2211, %v2213
        %2215 = vrot.lane.b32.xlu0 %v2145, 64
        %v2216 = vpop.permute.xlu0 %2215
        %2217 = vrot.lane.b32.xlu0 %v2147, 64
        %v2218 = vpop.permute.xlu0 %2217
        %2219 = vrot.lane.b32.xlu0 %v2149, 64
        %v2220 = vpop.permute.xlu0 %2219
        %2221 = vrot.lane.b32.xlu0 %v2151, 64
        %v2222 = vpop.permute.xlu0 %2221
        %2223 = vrot.lane.b32.xlu0 %v2154, 64
        %v2224 = vpop.permute.xlu0 %2223
        %2225 = vrot.lane.b32.xlu0 %v2156, 64
        %v2226 = vpop.permute.xlu0 %2225
        %2227 = vrot.lane.b32.xlu0 %v2158, 64
        %v2228 = vpop.permute.xlu0 %2227
        %2229 = vrot.lane.b32.xlu0 %v2160, 64
        %v2230 = vpop.permute.xlu0 %2229
        %2231 = vrot.lane.b32.xlu0 %v2163, 64
        %v2232 = vpop.permute.xlu0 %2231
        %2233 = vrot.lane.b32.xlu0 %v2165, 64
        %v2234 = vpop.permute.xlu0 %2233
        %2235 = vrot.lane.b32.xlu0 %v2167, 64
        %v2236 = vpop.permute.xlu0 %2235
        %2237 = vrot.lane.b32.xlu0 %v2169, 64
        %v2238 = vpop.permute.xlu0 %2237
        %2239 = vrot.lane.b32.xlu0 %v2172, 64
        %v2240 = vpop.permute.xlu0 %2239
        %2241 = vrot.lane.b32.xlu0 %v2174, 64
        %v2242 = vpop.permute.xlu0 %2241
        %2243 = vrot.lane.b32.xlu0 %v2176, 64
        %v2244 = vpop.permute.xlu0 %2243
        %2245 = vrot.lane.b32.xlu0 %v2178, 64
        %v2246 = vpop.permute.xlu0 %2245
        %2247 = vrot.lane.b32.xlu0 %v2181, 64
        %v2248 = vpop.permute.xlu0 %2247
        %2249 = vrot.lane.b32.xlu0 %v2183, 64
        %v2250 = vpop.permute.xlu0 %2249
        %2251 = vrot.lane.b32.xlu0 %v2185, 64
        %v2252 = vpop.permute.xlu0 %2251
        %2253 = vrot.lane.b32.xlu0 %v2187, 64
        %v2254 = vpop.permute.xlu0 %2253
        %2255 = vrot.lane.b32.xlu0 %v2190, 64
        %v2256 = vpop.permute.xlu0 %2255
        %2257 = vrot.lane.b32.xlu0 %v2192, 64
        %v2258 = vpop.permute.xlu0 %2257
        %2259 = vrot.lane.b32.xlu0 %v2194, 64
        %v2260 = vpop.permute.xlu0 %2259
        %2261 = vrot.lane.b32.xlu0 %v2196, 64
        %v2262 = vpop.permute.xlu0 %2261
        %2263 = vrot.lane.b32.xlu0 %v2199, 64
        %v2264 = vpop.permute.xlu0 %2263
        %2265 = vrot.lane.b32.xlu0 %v2201, 64
        %v2266 = vpop.permute.xlu0 %2265
        %2267 = vrot.lane.b32.xlu0 %v2203, 64
        %v2268 = vpop.permute.xlu0 %2267
        %2269 = vrot.lane.b32.xlu0 %v2205, 64
        %v2270 = vpop.permute.xlu0 %2269
        %2271 = vrot.lane.b32.xlu0 %v2208, 64
        %v2272 = vpop.permute.xlu0 %2271
        %2273 = vrot.lane.b32.xlu0 %v2210, 64
        %v2274 = vpop.permute.xlu0 %2273
        %2275 = vrot.lane.b32.xlu0 %v2212, 64
        %v2276 = vpop.permute.xlu0 %2275
        %2277 = vrot.lane.b32.xlu0 %v2214, 64
        %v2278 = vpop.permute.xlu0 %2277
        %v2311 = vsel %vm610, %v1959, %v2048
        %v2312 = vsel %vm610, %v1873, %v2050
        %v2313 = vsel %vm610, %v1875, %v2052
        %v2314 = vsel %vm610, %v1877, %v2054
        %v2315 = vsel %vm610, %v1960, %v2056
        %v2316 = vsel %vm610, %v1880, %v2058
        %v2317 = vsel %vm610, %v1882, %v2060
        %v2318 = vsel %vm610, %v1884, %v2062
        %v2319 = vsel %vm610, %v1961, %v2064
        %v2320 = vsel %vm610, %v1887, %v2066
        %v2321 = vsel %vm610, %v1889, %v2068
        %v2322 = vsel %vm610, %v1891, %v2070
        %v2323 = vsel %vm610, %v1962, %v2072
        %v2324 = vsel %vm610, %v1894, %v2074
        %v2325 = vsel %vm610, %v1896, %v2076
        %v2326 = vsel %vm610, %v1898, %v2078
        %v2327 = vsel %vm610, %v1963, %v2080
        %v2328 = vsel %vm610, %v1901, %v2082
        %v2329 = vsel %vm610, %v1903, %v2084
        %v2330 = vsel %vm610, %v1905, %v2086
        %v2331 = vsel %vm610, %v1964, %v2088
        %v2332 = vsel %vm610, %v1908, %v2090
        %v2333 = vsel %vm610, %v1910, %v2092
        %v2334 = vsel %vm610, %v1912, %v2094
        %v2335 = vsel %vm610, %v1965, %v2096
        %v2336 = vsel %vm610, %v1915, %v2098
        %v2337 = vsel %vm610, %v1917, %v2100
        %v2338 = vsel %vm610, %v1919, %v2102
        %v2339 = vsel %vm610, %v1966, %v2104
        %v2340 = vsel %vm610, %v1922, %v2106
        %v2341 = vsel %vm610, %v1924, %v2108
        %v2342 = vsel %vm610, %v1926, %v2110
        %vm2343 = vcmask 523264
        %v2344 = vsel %vm2343, %v2311, %v2216
        %v2345 = vsel %vm2343, %v2312, %v2218
        %v2346 = vsel %vm2343, %v2313, %v2220
        %v2347 = vsel %vm2343, %v2314, %v2222
        %v2348 = vsel %vm2343, %v2315, %v2224
        %v2349 = vsel %vm2343, %v2316, %v2226
        %v2350 = vsel %vm2343, %v2317, %v2228
        %v2351 = vsel %vm2343, %v2318, %v2230
        %v2352 = vsel %vm2343, %v2319, %v2232
        %v2353 = vsel %vm2343, %v2320, %v2234
        %v2354 = vsel %vm2343, %v2321, %v2236
        %v2355 = vsel %vm2343, %v2322, %v2238
        %v2356 = vsel %vm2343, %v2323, %v2240
        %v2357 = vsel %vm2343, %v2324, %v2242
        %v2358 = vsel %vm2343, %v2325, %v2244
        %v2359 = vsel %vm2343, %v2326, %v2246
        %v2360 = vsel %vm2343, %v2327, %v2248
        %v2361 = vsel %vm2343, %v2328, %v2250
        %v2362 = vsel %vm2343, %v2329, %v2252
        %v2363 = vsel %vm2343, %v2330, %v2254
        %v2364 = vsel %vm2343, %v2331, %v2256
        %v2365 = vsel %vm2343, %v2332, %v2258
        %v2366 = vsel %vm2343, %v2333, %v2260
        %v2367 = vsel %vm2343, %v2334, %v2262
        %v2368 = vsel %vm2343, %v2335, %v2264
        %v2369 = vsel %vm2343, %v2336, %v2266
        %v2370 = vsel %vm2343, %v2337, %v2268
        %v2371 = vsel %vm2343, %v2338, %v2270
        %v2372 = vsel %vm2343, %v2339, %v2272
        %v2373 = vsel %vm2343, %v2340, %v2274
        %v2374 = vsel %vm2343, %v2341, %v2276
        %v2375 = vsel %vm2343, %v2342, %v2278
        %v2376 = vld [vmem:[%s4] sm:$0xff]
        %v2377 = vld [vmem:[%s4 + $0x8] sm:$0xff]
        %v2378 = vld [vmem:[%s4 + $0x10] sm:$0xff]
        %v2379 = vld [vmem:[%s4 + $0x18] sm:$0xff]
        %v2380 = vld [vmem:[%s4 + $0x20] sm:$0xff]
        %v2381 = vld [vmem:[%s4 + $0x28] sm:$0xff]
        %v2382 = vld [vmem:[%s4 + $0x30] sm:$0xff]
        %v2383 = vld [vmem:[%s4 + $0x38] sm:$0xff]
        %v2384 = vld [vmem:[%s4 + $0x40] sm:$0xff]
        %v2385 = vld [vmem:[%s4 + $0x48] sm:$0xff]
        %v2386 = vld [vmem:[%s4 + $0x50] sm:$0xff]
        %v2387 = vld [vmem:[%s4 + $0x58] sm:$0xff]
        %v2388 = vld [vmem:[%s5] sm:$0x1]
        %v2390 = vlaneseq
        %v2391 = vshrl.u32 %v2390, 7
        %v2392 = vsub.s32 0, %v2391
        %v2393 = vrot.slane %v2388, %v2392
        %vm2395 = vcmask 785408
        %v2397 = vsel %vm2395, %v2344, 0
        %v2400 = vsel %vm2395, %v2345, 0
        %v2403 = vsel %vm2395, %v2346, 0
        %v2406 = vsel %vm2395, %v2347, 0
        %v2409 = vsel %vm2395, %v2348, 0
        %v2412 = vsel %vm2395, %v2349, 0
        %v2415 = vsel %vm2395, %v2350, 0
        %v2418 = vsel %vm2395, %v2351, 0
        %v2421 = vsel %vm2395, %v2352, 0
        %v2424 = vsel %vm2395, %v2353, 0
        %v2427 = vsel %vm2395, %v2354, 0
        %v2430 = vsel %vm2395, %v2355, 0
        %v2433 = vsel %vm2395, %v2356, 0
        %v2436 = vsel %vm2395, %v2357, 0
        %v2439 = vsel %vm2395, %v2358, 0
        %v2442 = vsel %vm2395, %v2359, 0
        %v2445 = vsel %vm2395, %v2360, 0
        %v2448 = vsel %vm2395, %v2361, 0
        %v2451 = vsel %vm2395, %v2362, 0
        %v2454 = vsel %vm2395, %v2363, 0
        %v2457 = vsel %vm2395, %v2364, 0
        %v2460 = vsel %vm2395, %v2365, 0
        %v2463 = vsel %vm2395, %v2366, 0
        %v2466 = vsel %vm2395, %v2367, 0
        %v2469 = vsel %vm2395, %v2368, 0
        %v2472 = vsel %vm2395, %v2369, 0
        %v2475 = vsel %vm2395, %v2370, 0
        %v2478 = vsel %vm2395, %v2371, 0
        %v2481 = vsel %vm2395, %v2372, 0
        %v2484 = vsel %vm2395, %v2373, 0
        %v2487 = vsel %vm2395, %v2374, 0
        %v2490 = vsel %vm2395, %v2375, 0
        %2492 = vmatprep.subr.mxu0 0.0
        %2493 = vmatpush1.msra.mxu0 %v2376
        %2494 = vmatprep.subr.mxu0 0.0
        %2495 = vmatpush1.msra.mxu0 %v2377
        %2496 = vmatprep.subr.mxu0 0.0
        %2497 = vmatpush1.msra.mxu0 %v2378
        %2498 = vmatprep.subr.mxu0 0.0
        %2499 = vmatpush1.msra.mxu0 %v2379
        %2500 = vmatprep.subr.mxu0 0.0
        %2501 = vmatpush1.msra.mxu0 %v2380
        %2502 = vmatprep.subr.mxu0 0.0
        %2503 = vmatpush1.msra.mxu0 %v2381
        %2504 = vmatprep.subr.mxu0 0.0
        %2505 = vmatpush1.msra.mxu0 %v2382
        %2506 = vmatprep.subr.mxu0 0.0
        %2507 = vmatpush1.msra.mxu0 %v2383
        %2508 = vmatprep.subr.mxu0 0.0
        %2509 = vmatpush1.msra.mxu0 %v2384
        %2510 = vmatprep.subr.mxu0 0.0
        %2511 = vmatpush1.msra.mxu0 %v2385
        %2512 = vmatprep.subr.mxu0 0.0
        %2513 = vmatpush1.msra.mxu0 %v2386
        %2514 = vmatprep.subr.mxu0 0.0
        %2515 = vmatpush1.msra.mxu0 %v2387
        %2516 = vmatprep.subr.mxu0 0.0
        %2517 = vmatpush1.msra.mxu0 0.0
        %2518 = vmatprep.subr.mxu0 0.0
        %2519 = vmatpush1.msra.mxu0 0.0
        %2520 = vmatprep.subr.mxu0 0.0
        %2521 = vmatpush1.msra.mxu0 0.0
        %2522 = vmatprep.subr.mxu0 0.0
        %2523 = vmatpush1.msra.mxu0 0.0
        %2524 = vmatprep.subr.mxu0 0.0
        %2525 = vmatpush1.msra.mxu0 0.0
        %2526 = vmatprep.subr.mxu0 0.0
        %2527 = vmatpush1.msra.mxu0 0.0
        %2528 = vmatprep.subr.mxu0 0.0
        %2529 = vmatpush1.msra.mxu0 0.0
        %2530 = vmatprep.subr.mxu0 0.0
        %2531 = vmatpush1.msra.mxu0 0.0
        %2532 = vmatprep.subr.mxu0 0.0
        %2533 = vmatpush1.msra.mxu0 0.0
        %2534 = vmatprep.subr.mxu0 0.0
        %2535 = vmatpush1.msra.mxu0 0.0
        %2536 = vmatprep.subr.mxu0 0.0
        %2537 = vmatpush1.msra.mxu0 0.0
        %2538 = vmatprep.subr.mxu0 0.0
        %2539 = vmatpush1.msra.mxu0 0.0
        %2540 = vmatprep.subr.mxu0 0.0
        %2541 = vmatpush1.msra.mxu0 0.0
        %2542 = vmatprep.subr.mxu0 0.0
        %2543 = vmatpush1.msra.mxu0 0.0
        %2544 = vmatprep.subr.mxu0 0.0
        %2545 = vmatpush1.msra.mxu0 0.0
        %2546 = vmatprep.subr.mxu0 0.0
        %2547 = vmatpush1.msra.mxu0 0.0
        %2548 = vmatprep.subr.mxu0 0.0
        %2549 = vmatpush1.msra.mxu0 0.0
        %2550 = vmatprep.subr.mxu0 0.0
        %2551 = vmatpush1.msra.mxu0 0.0
        %2552 = vmatprep.subr.mxu0 0.0
        %2553 = vmatpush1.msra.mxu0 0.0
        %2554 = vmatprep.subr.mxu0 0.0
        %2555 = vmatpush1.msra.mxu0 0.0
        %2556 = vmatprep.mubr.f32.mxu0 0.0
        %2557 = vmatmul.mubr.f32.gmra.mrb[0].mxu0 %v2397
        %v2558 = vpop.f32.mrb[0].mxu0
        %v2559 = vadd.f32 %v2393, %v2558
        %v2560 = vpop.f32.mrb[0].mxu0
        %2561 = vmatprep.mubr.f32.mxu0 0.0
        %2562 = vmatmul.mubr.f32.gmra.mrb[0].mxu0 %v2400
        %v2563 = vpop.f32.mrb[0].mxu0
        %v2564 = vadd.f32 %v2393, %v2563
        %v2565 = vpop.f32.mrb[0].mxu0
        %2566 = vmatprep.mubr.f32.mxu0 0.0
        %2567 = vmatmul.mubr.f32.gmra.mrb[0].mxu0 %v2403
        %v2568 = vpop.f32.mrb[0].mxu0
        %v2569 = vadd.f32 %v2393, %v2568
        %v2570 = vpop.f32.mrb[0].mxu0
        %2571 = vmatprep.mubr.f32.mxu0 0.0
        %2572 = vmatmul.mubr.f32.gmra.mrb[0].mxu0 %v2406
        %v2573 = vpop.f32.mrb[0].mxu0
        %v2574 = vadd.f32 %v2393, %v2573
        %v2575 = vpop.f32.mrb[0].mxu0
        %2576 = vmatprep.mubr.f32.mxu0 0.0
        %2577 = vmatmul.mubr.f32.gmra.mrb[0].mxu0 %v2409
        %v2578 = vpop.f32.mrb[0].mxu0
        %v2579 = vadd.f32 %v2393, %v2578
        %v2580 = vpop.f32.mrb[0].mxu0
        %2581 = vmatprep.mubr.f32.mxu0 0.0
        %2582 = vmatmul.mubr.f32.gmra.mrb[0].mxu0 %v2412
        %v2583 = vpop.f32.mrb[0].mxu0
        %v2584 = vadd.f32 %v2393, %v2583
        %v2585 = vpop.f32.mrb[0].mxu0
        %2586 = vmatprep.mubr.f32.mxu0 0.0
        %2587 = vmatmul.mubr.f32.gmra.mrb[0].mxu0 %v2415
        %v2588 = vpop.f32.mrb[0].mxu0
        %v2589 = vadd.f32 %v2393, %v2588
        %v2590 = vpop.f32.mrb[0].mxu0
        %2591 = vmatprep.mubr.f32.mxu0 0.0
        %2592 = vmatmul.mubr.f32.gmra.mrb[0].mxu0 %v2418
        %v2593 = vpop.f32.mrb[0].mxu0
        %v2594 = vadd.f32 %v2393, %v2593
        %v2595 = vpop.f32.mrb[0].mxu0
        %2596 = vmatprep.mubr.f32.mxu0 0.0
        %2597 = vmatmul.mubr.f32.gmra.mrb[0].mxu0 %v2421
        %v2598 = vpop.f32.mrb[0].mxu0
        %v2599 = vadd.f32 %v2393, %v2598
        %v2600 = vpop.f32.mrb[0].mxu0
        %2601 = vmatprep.mubr.f32.mxu0 0.0
        %2602 = vmatmul.mubr.f32.gmra.mrb[0].mxu0 %v2424
        %v2603 = vpop.f32.mrb[0].mxu0
        %v2604 = vadd.f32 %v2393, %v2603
        %v2605 = vpop.f32.mrb[0].mxu0
        %2606 = vmatprep.mubr.f32.mxu0 0.0
        %2607 = vmatmul.mubr.f32.gmra.mrb[0].mxu0 %v2427
        %v2608 = vpop.f32.mrb[0].mxu0
        %v2609 = vadd.f32 %v2393, %v2608
        %v2610 = vpop.f32.mrb[0].mxu0
        %2611 = vmatprep.mubr.f32.mxu0 0.0
        %2612 = vmatmul.mubr.f32.gmra.mrb[0].mxu0 %v2430
        %v2613 = vpop.f32.mrb[0].mxu0
        %v2614 = vadd.f32 %v2393, %v2613
        %v2615 = vpop.f32.mrb[0].mxu0
        %2616 = vmatprep.mubr.f32.mxu0 0.0
        %2617 = vmatmul.mubr.f32.gmra.mrb[0].mxu0 %v2433
        %v2618 = vpop.f32.mrb[0].mxu0
        %v2619 = vadd.f32 %v2393, %v2618
        %v2620 = vpop.f32.mrb[0].mxu0
        %2621 = vmatprep.mubr.f32.mxu0 0.0
        %2622 = vmatmul.mubr.f32.gmra.mrb[0].mxu0 %v2436
        %v2623 = vpop.f32.mrb[0].mxu0
        %v2624 = vadd.f32 %v2393, %v2623
        %v2625 = vpop.f32.mrb[0].mxu0
        %2626 = vmatprep.mubr.f32.mxu0 0.0
        %2627 = vmatmul.mubr.f32.gmra.mrb[0].mxu0 %v2439
        %v2628 = vpop.f32.mrb[0].mxu0
        %v2629 = vadd.f32 %v2393, %v2628
        %v2630 = vpop.f32.mrb[0].mxu0
        %2631 = vmatprep.mubr.f32.mxu0 0.0
        %2632 = vmatmul.mubr.f32.gmra.mrb[0].mxu0 %v2442
        %v2633 = vpop.f32.mrb[0].mxu0
        %v2634 = vadd.f32 %v2393, %v2633
        %v2635 = vpop.f32.mrb[0].mxu0
        %2636 = vmatprep.mubr.f32.mxu0 0.0
        %2637 = vmatmul.mubr.f32.gmra.mrb[0].mxu0 %v2445
        %v2638 = vpop.f32.mrb[0].mxu0
        %v2639 = vadd.f32 %v2393, %v2638
        %v2640 = vpop.f32.mrb[0].mxu0
        %2641 = vmatprep.mubr.f32.mxu0 0.0
        %2642 = vmatmul.mubr.f32.gmra.mrb[0].mxu0 %v2448
        %v2643 = vpop.f32.mrb[0].mxu0
        %v2644 = vadd.f32 %v2393, %v2643
        %v2645 = vpop.f32.mrb[0].mxu0
        %2646 = vmatprep.mubr.f32.mxu0 0.0
        %2647 = vmatmul.mubr.f32.gmra.mrb[0].mxu0 %v2451
        %v2648 = vpop.f32.mrb[0].mxu0
        %v2649 = vadd.f32 %v2393, %v2648
        %v2650 = vpop.f32.mrb[0].mxu0
        %2651 = vmatprep.mubr.f32.mxu0 0.0
        %2652 = vmatmul.mubr.f32.gmra.mrb[0].mxu0 %v2454
        %v2653 = vpop.f32.mrb[0].mxu0
        %v2654 = vadd.f32 %v2393, %v2653
        %v2655 = vpop.f32.mrb[0].mxu0
        %2656 = vmatprep.mubr.f32.mxu0 0.0
        %2657 = vmatmul.mubr.f32.gmra.mrb[0].mxu0 %v2457
        %v2658 = vpop.f32.mrb[0].mxu0
        %v2659 = vadd.f32 %v2393, %v2658
        %v2660 = vpop.f32.mrb[0].mxu0
        %2661 = vmatprep.mubr.f32.mxu0 0.0
        %2662 = vmatmul.mubr.f32.gmra.mrb[0].mxu0 %v2460
        %v2663 = vpop.f32.mrb[0].mxu0
        %v2664 = vadd.f32 %v2393, %v2663
        %v2665 = vpop.f32.mrb[0].mxu0
        %2666 = vmatprep.mubr.f32.mxu0 0.0
        %2667 = vmatmul.mubr.f32.gmra.mrb[0].mxu0 %v2463
        %v2668 = vpop.f32.mrb[0].mxu0
        %v2669 = vadd.f32 %v2393, %v2668
        %v2670 = vpop.f32.mrb[0].mxu0
        %2671 = vmatprep.mubr.f32.mxu0 0.0
        %2672 = vmatmul.mubr.f32.gmra.mrb[0].mxu0 %v2466
        %v2673 = vpop.f32.mrb[0].mxu0
        %v2674 = vadd.f32 %v2393, %v2673
        %v2675 = vpop.f32.mrb[0].mxu0
        %2676 = vmatprep.mubr.f32.mxu0 0.0
        %2677 = vmatmul.mubr.f32.gmra.mrb[0].mxu0 %v2469
        %v2678 = vpop.f32.mrb[0].mxu0
        %v2679 = vadd.f32 %v2393, %v2678
        %v2680 = vpop.f32.mrb[0].mxu0
        %2681 = vmatprep.mubr.f32.mxu0 0.0
        %2682 = vmatmul.mubr.f32.gmra.mrb[0].mxu0 %v2472
        %v2683 = vpop.f32.mrb[0].mxu0
        %v2684 = vadd.f32 %v2393, %v2683
        %v2685 = vpop.f32.mrb[0].mxu0
        %2686 = vmatprep.mubr.f32.mxu0 0.0
        %2687 = vmatmul.mubr.f32.gmra.mrb[0].mxu0 %v2475
        %v2688 = vpop.f32.mrb[0].mxu0
        %v2689 = vadd.f32 %v2393, %v2688
        %v2690 = vpop.f32.mrb[0].mxu0
        %2691 = vmatprep.mubr.f32.mxu0 0.0
        %2692 = vmatmul.mubr.f32.gmra.mrb[0].mxu0 %v2478
        %v2693 = vpop.f32.mrb[0].mxu0
        %v2694 = vadd.f32 %v2393, %v2693
        %v2695 = vpop.f32.mrb[0].mxu0
        %2696 = vmatprep.mubr.f32.mxu0 0.0
        %2697 = vmatmul.mubr.f32.gmra.mrb[0].mxu0 %v2481
        %v2698 = vpop.f32.mrb[0].mxu0
        %v2699 = vadd.f32 %v2393, %v2698
        %v2700 = vpop.f32.mrb[0].mxu0
        %2701 = vmatprep.mubr.f32.mxu0 0.0
        %2702 = vmatmul.mubr.f32.gmra.mrb[0].mxu0 %v2484
        %v2703 = vpop.f32.mrb[0].mxu0
        %v2704 = vadd.f32 %v2393, %v2703
        %v2705 = vpop.f32.mrb[0].mxu0
        %2706 = vmatprep.mubr.f32.mxu0 0.0
        %2707 = vmatmul.mubr.f32.gmra.mrb[0].mxu0 %v2487
        %v2708 = vpop.f32.mrb[0].mxu0
        %v2709 = vadd.f32 %v2393, %v2708
        %v2710 = vpop.f32.mrb[0].mxu0
        %2711 = vmatprep.mubr.f32.mxu0 0.0
        %2712 = vmatmul.mubr.f32.gmra.mrb[0].mxu0 %v2490
        %v2713 = vpop.f32.mrb[0].mxu0
        %v2714 = vadd.f32 %v2393, %v2713
        %v2715 = vpop.f32.mrb[0].mxu0
        %2716 = vdwg.mxu0
        %v2717 = vmax.f32 %v2559, 0.0
        %v2718 = vmax.f32 %v2564, 0.0
        %v2719 = vmax.f32 %v2569, 0.0
        %v2720 = vmax.f32 %v2574, 0.0
        %v2721 = vmax.f32 %v2579, 0.0
        %v2722 = vmax.f32 %v2584, 0.0
        %v2723 = vmax.f32 %v2589, 0.0
        %v2724 = vmax.f32 %v2594, 0.0
        %v2725 = vmax.f32 %v2599, 0.0
        %v2726 = vmax.f32 %v2604, 0.0
        %v2727 = vmax.f32 %v2609, 0.0
        %v2728 = vmax.f32 %v2614, 0.0
        %v2729 = vmax.f32 %v2619, 0.0
        %v2730 = vmax.f32 %v2624, 0.0
        %v2731 = vmax.f32 %v2629, 0.0
        %v2732 = vmax.f32 %v2634, 0.0
        %v2733 = vmax.f32 %v2639, 0.0
        %v2734 = vmax.f32 %v2644, 0.0
        %v2735 = vmax.f32 %v2649, 0.0
        %v2736 = vmax.f32 %v2654, 0.0
        %v2737 = vmax.f32 %v2659, 0.0
        %v2738 = vmax.f32 %v2664, 0.0
        %v2739 = vmax.f32 %v2669, 0.0
        %v2740 = vmax.f32 %v2674, 0.0
        %v2741 = vmax.f32 %v2679, 0.0
        %v2742 = vmax.f32 %v2684, 0.0
        %v2743 = vmax.f32 %v2689, 0.0
        %v2744 = vmax.f32 %v2694, 0.0
        %v2745 = vmax.f32 %v2699, 0.0
        %v2746 = vmax.f32 %v2704, 0.0
        %v2747 = vmax.f32 %v2709, 0.0
        %v2748 = vmax.f32 %v2714, 0.0
        %v2749 = vsel %vm610, %v2717, 0.0
        %v2750 = vsel %vm610, %v2718, 0.0
        %v2751 = vadd.f32 %v2749, %v2750
        %v2752 = vsel %vm610, %v2719, 0.0
        %v2753 = vadd.f32 %v2751, %v2752
        %v2754 = vsel %vm610, %v2720, 0.0
        %v2755 = vadd.f32 %v2753, %v2754
        %v2756 = vrot.slane %v2755, 4
        %v2757 = vadd.f32 %v2755, %v2756
        %v2758 = vrot.slane %v2757, 2
        %v2759 = vadd.f32 %v2757, %v2758
        %v2760 = vrot.slane %v2759, 1
        %v2761 = vadd.f32 %v2759, %v2760
        %v2762 = vsel %vm610, %v2721, 0.0
        %v2763 = vsel %vm610, %v2722, 0.0
        %v2764 = vadd.f32 %v2762, %v2763
        %v2765 = vsel %vm610, %v2723, 0.0
        %v2766 = vadd.f32 %v2764, %v2765
        %v2767 = vsel %vm610, %v2724, 0.0
        %v2768 = vadd.f32 %v2766, %v2767
        %v2769 = vrot.slane %v2768, 4
        %v2770 = vadd.f32 %v2768, %v2769
        %v2771 = vrot.slane %v2770, 2
        %v2772 = vadd.f32 %v2770, %v2771
        %v2773 = vrot.slane %v2772, 1
        %v2774 = vadd.f32 %v2772, %v2773
        %v2775 = vsel %vm610, %v2725, 0.0
        %v2776 = vsel %vm610, %v2726, 0.0
        %v2777 = vadd.f32 %v2775, %v2776
        %v2778 = vsel %vm610, %v2727, 0.0
        %v2779 = vadd.f32 %v2777, %v2778
        %v2780 = vsel %vm610, %v2728, 0.0
        %v2781 = vadd.f32 %v2779, %v2780
        %v2782 = vrot.slane %v2781, 4
        %v2783 = vadd.f32 %v2781, %v2782
        %v2784 = vrot.slane %v2783, 2
        %v2785 = vadd.f32 %v2783, %v2784
        %v2786 = vrot.slane %v2785, 1
        %v2787 = vadd.f32 %v2785, %v2786
        %v2788 = vsel %vm610, %v2729, 0.0
        %v2789 = vsel %vm610, %v2730, 0.0
        %v2790 = vadd.f32 %v2788, %v2789
        %v2791 = vsel %vm610, %v2731, 0.0
        %v2792 = vadd.f32 %v2790, %v2791
        %v2793 = vsel %vm610, %v2732, 0.0
        %v2794 = vadd.f32 %v2792, %v2793
        %v2795 = vrot.slane %v2794, 4
        %v2796 = vadd.f32 %v2794, %v2795
        %v2797 = vrot.slane %v2796, 2
        %v2798 = vadd.f32 %v2796, %v2797
        %v2799 = vrot.slane %v2798, 1
        %v2800 = vadd.f32 %v2798, %v2799
        %v2801 = vsel %vm610, %v2733, 0.0
        %v2802 = vsel %vm610, %v2734, 0.0
        %v2803 = vadd.f32 %v2801, %v2802
        %v2804 = vsel %vm610, %v2735, 0.0
        %v2805 = vadd.f32 %v2803, %v2804
        %v2806 = vsel %vm610, %v2736, 0.0
        %v2807 = vadd.f32 %v2805, %v2806
        %v2808 = vrot.slane %v2807, 4
        %v2809 = vadd.f32 %v2807, %v2808
        %v2810 = vrot.slane %v2809, 2
        %v2811 = vadd.f32 %v2809, %v2810
        %v2812 = vrot.slane %v2811, 1
        %v2813 = vadd.f32 %v2811, %v2812
        %v2814 = vsel %vm610, %v2737, 0.0
        %v2815 = vsel %vm610, %v2738, 0.0
        %v2816 = vadd.f32 %v2814, %v2815
        %v2817 = vsel %vm610, %v2739, 0.0
        %v2818 = vadd.f32 %v2816, %v2817
        %v2819 = vsel %vm610, %v2740, 0.0
        %v2820 = vadd.f32 %v2818, %v2819
        %v2821 = vrot.slane %v2820, 4
        %v2822 = vadd.f32 %v2820, %v2821
        %v2823 = vrot.slane %v2822, 2
        %v2824 = vadd.f32 %v2822, %v2823
        %v2825 = vrot.slane %v2824, 1
        %v2826 = vadd.f32 %v2824, %v2825
        %v2827 = vsel %vm610, %v2741, 0.0
        %v2828 = vsel %vm610, %v2742, 0.0
        %v2829 = vadd.f32 %v2827, %v2828
        %v2830 = vsel %vm610, %v2743, 0.0
        %v2831 = vadd.f32 %v2829, %v2830
        %v2832 = vsel %vm610, %v2744, 0.0
        %v2833 = vadd.f32 %v2831, %v2832
        %v2834 = vrot.slane %v2833, 4
        %v2835 = vadd.f32 %v2833, %v2834
        %v2836 = vrot.slane %v2835, 2
        %v2837 = vadd.f32 %v2835, %v2836
        %v2838 = vrot.slane %v2837, 1
        %v2839 = vadd.f32 %v2837, %v2838
        %v2840 = vsel %vm610, %v2745, 0.0
        %v2841 = vsel %vm610, %v2746, 0.0
        %v2842 = vadd.f32 %v2840, %v2841
        %v2843 = vsel %vm610, %v2747, 0.0
        %v2844 = vadd.f32 %v2842, %v2843
        %v2845 = vsel %vm610, %v2748, 0.0
        %v2846 = vadd.f32 %v2844, %v2845
        %v2847 = vrot.slane %v2846, 4
        %v2848 = vadd.f32 %v2846, %v2847
        %v2849 = vrot.slane %v2848, 2
        %v2850 = vadd.f32 %v2848, %v2849
        %v2851 = vrot.slane %v2850, 1
        %v2852 = vadd.f32 %v2850, %v2851
        %v2853 = vmul.f32 %v2761, 0.03125
        %v2854 = vmul.f32 %v2774, 0.03125
        %v2855 = vmul.f32 %v2787, 0.03125
        %v2856 = vmul.f32 %v2800, 0.03125
        %v2857 = vmul.f32 %v2813, 0.03125
        %v2858 = vmul.f32 %v2826, 0.03125
        %v2859 = vmul.f32 %v2839, 0.03125
        %v2860 = vmul.f32 %v2852, 0.03125
        %v2861 = vld [vmem:[%s6] sm:$0xff]
        %v2862 = vld [vmem:[%s6 + $0x8] sm:$0xff]
        %v2863 = vld [vmem:[%s6 + $0x10] sm:$0xff]
        %v2864 = vld [vmem:[%s6 + $0x18] sm:$0xff]
        %v2865 = vld [vmem:[%s7] sm:$0x1]
        %v2867 = vlaneseq
        %v2868 = vshrl.u32 %v2867, 7
        %v2869 = vsub.s32 0, %v2868
        %v2870 = vrot.slane %v2865, %v2869
        %vm2880 = vcmask 1041409
        %v2881 = vsel %vm2880, %v2854, %v2853
        %vm2882 = vcmask 1042434
        %v2883 = vsel %vm2882, %v2855, %v2881
        %vm2884 = vcmask 1043459
        %v2885 = vsel %vm2884, %v2856, %v2883
        %vm2886 = vcmask 1044484
        %v2887 = vsel %vm2886, %v2857, %v2885
        %vm2888 = vcmask 1045509
        %v2889 = vsel %vm2888, %v2858, %v2887
        %vm2890 = vcmask 1046534
        %v2891 = vsel %vm2890, %v2859, %v2889
        %vm2892 = vcmask 1047559
        %v2893 = vsel %vm2892, %v2860, %v2891
        %v2894 = vsel %vm610, %v2893, 0
        %2896 = vmatprep.subr.mxu0 0.0
        %2897 = vmatpush1.msra.mxu0 %v2861
        %2898 = vmatprep.subr.mxu0 0.0
        %2899 = vmatpush1.msra.mxu0 %v2862
        %2900 = vmatprep.subr.mxu0 0.0
        %2901 = vmatpush1.msra.mxu0 %v2863
        %2902 = vmatprep.subr.mxu0 0.0
        %2903 = vmatpush1.msra.mxu0 %v2864
        %2904 = vmatprep.subr.mxu0 0.0
        %2905 = vmatpush1.msra.mxu0 0.0
        %2906 = vmatprep.subr.mxu0 0.0
        %2907 = vmatpush1.msra.mxu0 0.0
        %2908 = vmatprep.subr.mxu0 0.0
        %2909 = vmatpush1.msra.mxu0 0.0
        %2910 = vmatprep.subr.mxu0 0.0
        %2911 = vmatpush1.msra.mxu0 0.0
        %2912 = vmatprep.subr.mxu0 0.0
        %2913 = vmatpush1.msra.mxu0 0.0
        %2914 = vmatprep.subr.mxu0 0.0
        %2915 = vmatpush1.msra.mxu0 0.0
        %2916 = vmatprep.subr.mxu0 0.0
        %2917 = vmatpush1.msra.mxu0 0.0
        %2918 = vmatprep.subr.mxu0 0.0
        %2919 = vmatpush1.msra.mxu0 0.0
        %2920 = vmatprep.subr.mxu0 0.0
        %2921 = vmatpush1.msra.mxu0 0.0
        %2922 = vmatprep.subr.mxu0 0.0
        %2923 = vmatpush1.msra.mxu0 0.0
        %2924 = vmatprep.subr.mxu0 0.0
        %2925 = vmatpush1.msra.mxu0 0.0
        %2926 = vmatprep.subr.mxu0 0.0
        %2927 = vmatpush1.msra.mxu0 0.0
        %2928 = vmatprep.subr.mxu0 0.0
        %2929 = vmatpush1.msra.mxu0 0.0
        %2930 = vmatprep.subr.mxu0 0.0
        %2931 = vmatpush1.msra.mxu0 0.0
        %2932 = vmatprep.subr.mxu0 0.0
        %2933 = vmatpush1.msra.mxu0 0.0
        %2934 = vmatprep.subr.mxu0 0.0
        %2935 = vmatpush1.msra.mxu0 0.0
        %2936 = vmatprep.subr.mxu0 0.0
        %2937 = vmatpush1.msra.mxu0 0.0
        %2938 = vmatprep.subr.mxu0 0.0
        %2939 = vmatpush1.msra.mxu0 0.0
        %2940 = vmatprep.subr.mxu0 0.0
        %2941 = vmatpush1.msra.mxu0 0.0
        %2942 = vmatprep.subr.mxu0 0.0
        %2943 = vmatpush1.msra.mxu0 0.0
        %2944 = vmatprep.subr.mxu0 0.0
        %2945 = vmatpush1.msra.mxu0 0.0
        %2946 = vmatprep.subr.mxu0 0.0
        %2947 = vmatpush1.msra.mxu0 0.0
        %2948 = vmatprep.subr.mxu0 0.0
        %2949 = vmatpush1.msra.mxu0 0.0
        %2950 = vmatprep.subr.mxu0 0.0
        %2951 = vmatpush1.msra.mxu0 0.0
        %2952 = vmatprep.subr.mxu0 0.0
        %2953 = vmatpush1.msra.mxu0 0.0
        %2954 = vmatprep.subr.mxu0 0.0
        %2955 = vmatpush1.msra.mxu0 0.0
        %2956 = vmatprep.subr.mxu0 0.0
        %2957 = vmatpush1.msra.mxu0 0.0
        %2958 = vmatprep.subr.mxu0 0.0
        %2959 = vmatpush1.msra.mxu0 0.0
        %2960 = vmatprep.mubr.f32.mxu0 0.0
        %2961 = vmatmul.mubr.f32.gmra.mrb[0].mxu0 %v2894
        %v2962 = vpop.f32.mrb[0].mxu0
        %v2963 = vadd.f32 %v2870, %v2962
        %v2964 = vpop.f32.mrb[0].mxu0
        %2965 = vdwg.mxu0
        %v2966 = vmax.f32 %v2963, 0.0
        %v2967 = vld [vmem:[%s8] sm:$0xff]
        %v2968 = vld [vmem:[%s8 + $0x8] sm:$0xff]
        %v2969 = vld [vmem:[%s8 + $0x10] sm:$0xff]
        %v2970 = vld [vmem:[%s8 + $0x18] sm:$0xff]
        %v2971 = vld [vmem:[%s8 + $0x20] sm:$0xff]
        %v2972 = vld [vmem:[%s8 + $0x28] sm:$0xff]
        %v2973 = vld [vmem:[%s8 + $0x30] sm:$0xff]
        %v2974 = vld [vmem:[%s8 + $0x38] sm:$0xff]
        %v2975 = vld [vmem:[%s9] sm:$0x1]
        %v2977 = vlaneseq
        %v2978 = vshrl.u32 %v2977, 7
        %v2979 = vsub.s32 0, %v2978
        %v2980 = vrot.slane %v2975, %v2979
        %v2983 = vsel %vm2343, %v2966, 0
        %2985 = vmatprep.subr.mxu0 0.0
        %2986 = vmatpush1.msra.mxu0 %v2967
        %2987 = vmatprep.subr.mxu0 0.0
        %2988 = vmatpush1.msra.mxu0 %v2968
        %2989 = vmatprep.subr.mxu0 0.0
        %2990 = vmatpush1.msra.mxu0 %v2969
        %2991 = vmatprep.subr.mxu0 0.0
        %2992 = vmatpush1.msra.mxu0 %v2970
        %2993 = vmatprep.subr.mxu0 0.0
        %2994 = vmatpush1.msra.mxu0 %v2971
        %2995 = vmatprep.subr.mxu0 0.0
        %2996 = vmatpush1.msra.mxu0 %v2972
        %2997 = vmatprep.subr.mxu0 0.0
        %2998 = vmatpush1.msra.mxu0 %v2973
        %2999 = vmatprep.subr.mxu0 0.0
        %3000 = vmatpush1.msra.mxu0 %v2974
        %3001 = vmatprep.subr.mxu0 0.0
        %3002 = vmatpush1.msra.mxu0 0.0
        %3003 = vmatprep.subr.mxu0 0.0
        %3004 = vmatpush1.msra.mxu0 0.0
        %3005 = vmatprep.subr.mxu0 0.0
        %3006 = vmatpush1.msra.mxu0 0.0
        %3007 = vmatprep.subr.mxu0 0.0
        %3008 = vmatpush1.msra.mxu0 0.0
        %3009 = vmatprep.subr.mxu0 0.0
        %3010 = vmatpush1.msra.mxu0 0.0
        %3011 = vmatprep.subr.mxu0 0.0
        %3012 = vmatpush1.msra.mxu0 0.0
        %3013 = vmatprep.subr.mxu0 0.0
        %3014 = vmatpush1.msra.mxu0 0.0
        %3015 = vmatprep.subr.mxu0 0.0
        %3016 = vmatpush1.msra.mxu0 0.0
        %3017 = vmatprep.subr.mxu0 0.0
        %3018 = vmatpush1.msra.mxu0 0.0
        %3019 = vmatprep.subr.mxu0 0.0
        %3020 = vmatpush1.msra.mxu0 0.0
        %3021 = vmatprep.subr.mxu0 0.0
        %3022 = vmatpush1.msra.mxu0 0.0
        %3023 = vmatprep.subr.mxu0 0.0
        %3024 = vmatpush1.msra.mxu0 0.0
        %3025 = vmatprep.subr.mxu0 0.0
        %3026 = vmatpush1.msra.mxu0 0.0
        %3027 = vmatprep.subr.mxu0 0.0
        %3028 = vmatpush1.msra.mxu0 0.0
        %3029 = vmatprep.subr.mxu0 0.0
        %3030 = vmatpush1.msra.mxu0 0.0
        %3031 = vmatprep.subr.mxu0 0.0
        %3032 = vmatpush1.msra.mxu0 0.0
        %3033 = vmatprep.subr.mxu0 0.0
        %3034 = vmatpush1.msra.mxu0 0.0
        %3035 = vmatprep.subr.mxu0 0.0
        %3036 = vmatpush1.msra.mxu0 0.0
        %3037 = vmatprep.subr.mxu0 0.0
        %3038 = vmatpush1.msra.mxu0 0.0
        %3039 = vmatprep.subr.mxu0 0.0
        %3040 = vmatpush1.msra.mxu0 0.0
        %3041 = vmatprep.subr.mxu0 0.0
        %3042 = vmatpush1.msra.mxu0 0.0
        %3043 = vmatprep.subr.mxu0 0.0
        %3044 = vmatpush1.msra.mxu0 0.0
        %3045 = vmatprep.subr.mxu0 0.0
        %3046 = vmatpush1.msra.mxu0 0.0
        %3047 = vmatprep.subr.mxu0 0.0
        %3048 = vmatpush1.msra.mxu0 0.0
        %3049 = vmatprep.mubr.f32.mxu0 0.0
        %3050 = vmatmul.mubr.f32.gmra.mrb[0].mxu0 %v2983
        %v3051 = vpop.f32.mrb[0].mxu0
        %v3052 = vadd.f32 %v2980, %v3051
        %v3053 = vpop.f32.mrb[0].mxu0
        %3054 = vdwg.mxu0
        %3055 = vst [vmem:[%s350] sm:$0xff] %v3052
        %s3056 = sand.u32 %s247, 1
        %s3057 = scalar_lea.sflag [#allocation3], %s3056
        %s3058 = sand.u32 %s247, 1
        %s3059 = smul.addr %s3058, 8
        %s3060 = scalar_lea.vmem [#allocation2], %s3059
        // Predicated region
        $region61: #{tpu_custom_call.1} parent=59 // pred_check
          %p3061 = pneg %p257
        $region62: #{tpu_custom_call.1} parent=59 // pred_check_branch
          %3063 = sbr.rel (%p3061) target = $region64
        $region63: #{tpu_custom_call.1} parent=59 // pred_region
          %s3065 = ssub.s32 128, 128
          %3066 = vsyncadd %s3057, %s3065
          %s3067 = smul.addr %s24, 128
          %s3068 = scalar_lea.hbm %s10, %s3067
          %s3070 = sshll.u32 %s3060, 4
          %s3071 = int_to_ptr.vmem [resolvable:$true] %s3070
          %3073 = dma.vmem_to_hbm [thread:$0]  %s3071, 128, %s3068, %s3057
        $region64: #{tpu_custom_call.1} parent=59 // pred_fallthru
          _
      $region60: #{tpu_custom_call.1} parent=5 // pred_fallthru
        _
      %p3074 = scmp.le.s32.totalorder 2, %s19
      // Predicated region
      $region65: #{tpu_custom_call.1} parent=5 // pred_check
        %p3075 = pneg %p3074
      $region66: #{tpu_custom_call.1} parent=5 // pred_check_branch
        %3077 = sbr.rel (%p3075) target = $region68
      $region67: #{tpu_custom_call.1} parent=5 // pred_region
        %s3078 = ssub.s32 %s19, 2
        // Predicated region
        $region69: #{tpu_custom_call.1} parent=67 // pred_check
          %p3079 = pneg %p263
        $region70: #{tpu_custom_call.1} parent=67 // pred_check_branch
          %3081 = sbr.rel (%p3079) target = $region72
        $region71: #{tpu_custom_call.1} parent=67 // pred_region
          %s3082 = sand.u32 %s248, 1
          %s3083 = scalar_lea.sflag [#allocation3], %s3082
          %s3084 = sand.u32 %s248, 1
          %s3085 = smul.addr %s3084, 8
          %s3086 = scalar_lea.vmem [#allocation2], %s3085
          %3087 = dma.done %s3083, 128
        $region72: #{tpu_custom_call.1} parent=67 // pred_fallthru
          _
      $region68: #{tpu_custom_call.1} parent=5 // pred_fallthru
        _
    $region6: #{tpu_custom_call.1} parent=1 // loop_footer
      %s23 = sadd.s32 1, %s19
    $region7: #{tpu_custom_call.1} parent=1 // loop_footer_branch
      %18 = sbr.rel target = $region3
    $region8: #{tpu_custom_call.1} parent=1 // loop_exit
      _
    %3088 = vsyncpa [#allocation3], 1
    %s3089 = scalar_lea.sflag [#allocation3], 1
    %3090 = vsyncpa %s3089, 1

</llo_original>
